<compile_context>
chip_gen: v7x
topology: tpu7x:2x2x1
jax: 0.10.0
libtpu: 0.0.40
codegen_flags: <defaults>
</compile_context>

<pallas_src>
import functools

import jax
import jax.numpy as jnp
from jax.experimental import pallas as pl
from jax.experimental.pallas import tpu as pltpu


def rnn_fc_kernel(x_ref,       # (T, B, D)     time-major input (f32)
                  wih0_ref,    # (D, H)        layer-0 input->hidden (transposed)
                  whh0_ref,    # (H, H)        layer-0 hidden->hidden (transposed)
                  wih1_ref,    # (H, H)        layer-1 input->hidden (transposed)
                  whh1_ref,    # (H, H)        layer-1 hidden->hidden (transposed)
                  wfc_ref,     # (T*H, Cp)     fc weight (transposed, C padded)
                  bias_ref,    # (1, 2H+Cp)    [b0 | b1 | bfc] fused, f32
                  out_ref,     # (B, Cp)       logits (lane-dense, padded), f32
                  *, compute_dtype):
    T, B, D = x_ref.shape
    H = whh0_ref.shape[0]
    Cp = out_ref.shape[1]

    # Fused bias operand (single small DMA); broadcasts hoisted out of the loop
    # (JAX does not CSE broadcast_in_dim).
    b0 = bias_ref[:, 0:H]                                        # (1, H)
    b1 = jnp.broadcast_to(bias_ref[:, H:2 * H], (B, H))          # (B, H)
    bfc = bias_ref[:, 2 * H:2 * H + Cp]                          # (1, Cp)

    # ---- hoisted layer-0 input projection (no serial dependence on h) -----
    # One (T*B, D) @ (D, H) matmul instead of T short-M pushes on the serial
    # path; the b0 broadcast happens exactly once.
    x2d = x_ref[...].reshape(T * B, D).astype(compute_dtype)
    xp = (jnp.dot(x2d, wih0_ref[...], preferred_element_type=jnp.float32)
          + b0)                                                  # (T*B, H) f32

    h0 = jnp.zeros((B, H), jnp.float32)
    h1 = jnp.zeros((B, H), jnp.float32)
    # fc accumulator lives in vregs (1 vreg at B=8, Cp=128); starts at bias.
    acc = jnp.broadcast_to(bfc, (B, Cp))                         # (B, Cp) f32

    # T is small and static -> compile-time unroll gives the scheduler full
    # visibility to overlap MXU pushes / pops / EUP tanh across timesteps.
    for t in range(T):
        if t == 0:
            # h0_prev == h1_prev == 0: skip both recurrent dots.
            h0 = jnp.tanh(xp[:B, :])
            h1 = jnp.tanh(
                jnp.dot(h0.astype(compute_dtype), wih1_ref[...],
                        preferred_element_type=jnp.float32) + b1)
        else:
            # Layer-1 recurrent partial from h1_{t-1}: independent of h0_t,
            # so it overlaps the layer-0 recurrent dot below on the MXU.
            p1 = jnp.dot(h1.astype(compute_dtype), whh1_ref[...],
                         preferred_element_type=jnp.float32)
            # Layer 0: only the recurrent dot remains inside the recurrence.
            h0 = jnp.tanh(
                xp[t * B:(t + 1) * B, :]
                + jnp.dot(h0.astype(compute_dtype), whh0_ref[...],
                          preferred_element_type=jnp.float32))
            # Layer 1.
            h1 = jnp.tanh(
                jnp.dot(h0.astype(compute_dtype), wih1_ref[...],
                        preferred_element_type=jnp.float32) + p1 + b1)
        # fc accumulated on-the-fly: K=H partial per step, off the serial
        # recurrence (no dependence on h0_{t+1}/h1_{t+1}).
        acc = acc + jnp.dot(h1.astype(compute_dtype),
                            wfc_ref[t * H:(t + 1) * H, :],
                            preferred_element_type=jnp.float32)

    out_ref[...] = acc


def pack_params(params, *, compute_dtype=jnp.bfloat16):
    """One-time weight packing (call outside the per-forward hot path).

    Transposes weights, casts them to `compute_dtype`, zero-pads the fc weight
    to a lane-dense Cp (multiple of 128), and fuses the three biases into one
    f32 operand.  Accumulation inside the kernel stays f32.
    """
    (wih0, whh0, bih0, bhh0,
     wih1, whh1, bih1, bhh1,
     wfc, bfc) = params
    H = whh0.shape[0]
    C, TH = wfc.shape
    Cp = ((C + 127) // 128) * 128

    wih0_t = wih0.T.astype(compute_dtype)                        # (D, H)
    whh0_t = whh0.T.astype(compute_dtype)                        # (H, H)
    wih1_t = wih1.T.astype(compute_dtype)                        # (H, H)
    whh1_t = whh1.T.astype(compute_dtype)                        # (H, H)
    # Padded columns are zero, so slicing back to C is exact.
    wfc_p = jnp.zeros((TH, Cp), compute_dtype).at[:, :C].set(
        wfc.T.astype(compute_dtype))                             # (T*H, Cp)
    bias = jnp.zeros((1, 2 * H + Cp), jnp.float32)
    bias = bias.at[0, :H].set((bih0 + bhh0).astype(jnp.float32))
    bias = bias.at[0, H:2 * H].set((bih1 + bhh1).astype(jnp.float32))
    bias = bias.at[0, 2 * H:2 * H + C].set(bfc.astype(jnp.float32))
    return (wih0_t, whh0_t, wih1_t, whh1_t, wfc_p, bias)


def rnn_forward_packed(x, packed, *, num_classes):
    """x: (B, T, D) batch-first (like the PyTorch module), packed = pack_params(...)."""
    wih0_t, whh0_t, wih1_t, whh1_t, wfc_p, bias = packed
    compute_dtype = wih0_t.dtype
    B, T, D = x.shape
    Cp = wfc_p.shape[1]

    x_tm = jnp.transpose(x, (1, 0, 2))                           # (T, B, D)
    vmem = pl.BlockSpec(memory_space=pltpu.MemorySpace.VMEM)
    out_p = pl.pallas_call(
        functools.partial(rnn_fc_kernel, compute_dtype=compute_dtype),
        out_shape=jax.ShapeDtypeStruct((B, Cp), jnp.float32),
        in_specs=[vmem] * 7,
        out_specs=vmem,
    )(x_tm, wih0_t, whh0_t, wih1_t, whh1_t, wfc_p, bias)
    return out_p[:, :num_classes]


def rnn_forward(x, params, *, compute_dtype=jnp.bfloat16):
    """Convenience wrapper: pack + run (prefer pack_params once for real use)."""
    num_classes = params[8].shape[0]
    return rnn_forward_packed(x, pack_params(params, compute_dtype=compute_dtype),
                              num_classes=num_classes)


def rnn_reference(x, params):
    """Pure-JAX reference matching torch.nn.RNN(num_layers=2, batch_first) + fc."""
    (wih0, whh0, bih0, bhh0,
     wih1, whh1, bih1, bhh1,
     wfc, bfc) = params
    B, T, D = x.shape
    H = whh0.shape[0]
    h0 = jnp.zeros((B, H), jnp.float32)
    h1 = jnp.zeros((B, H), jnp.float32)
    outs = []
    for t in range(T):
        h0 = jnp.tanh(x[:, t] @ wih0.T + bih0 + h0 @ whh0.T + bhh0)
        h1 = jnp.tanh(h0 @ wih1.T + bih1 + h1 @ whh1.T + bhh1)
        outs.append(h1)
    out = jnp.stack(outs, axis=1).reshape(B, T * H)
    return out @ wfc.T + bfc


if __name__ == "__main__":
    # Small shapes consistent with the module's forward (fc depends on T*H).
    B, T = 8, 5               # sequence_length = 5
    D, H, C = 256, 128, 3     # input_feature_size, hidden_size, num_classes

    key = jax.random.PRNGKey(0)
    keys = jax.random.split(key, 11)
    s_rnn = 1.0 / jnp.sqrt(H)        # PyTorch nn.RNN-style uniform init
    s_fc = 1.0 / jnp.sqrt(H * T)     # PyTorch nn.Linear-style uniform init

    def u(k, shape, s):
        return jax.random.uniform(k, shape, jnp.float32, -s, s)

    params = (
        u(keys[0], (H, D), s_rnn),       # wih0
        u(keys[1], (H, H), s_rnn),       # whh0
        u(keys[2], (H,), s_rnn),         # bih0
        u(keys[3], (H,), s_rnn),         # bhh0
        u(keys[4], (H, H), s_rnn),       # wih1
        u(keys[5], (H, H), s_rnn),       # whh1
        u(keys[6], (H,), s_rnn),         # bih1
        u(keys[7], (H,), s_rnn),         # bhh1
        u(keys[8], (C, H * T), s_fc),    # fc weight
        u(keys[9], (C,), s_fc),          # fc bias
    )

    x = jax.random.normal(keys[10], (B, T, D), jnp.float32)
    ref = jax.block_until_ready(rnn_reference(x, params))

    # bf16 MXU path (default): weights/dot-LHS in bf16, f32 accumulation.
    packed_bf16 = jax.tree_util.tree_map(
        jax.block_until_ready, pack_params(params, compute_dtype=jnp.bfloat16))
    fwd_bf16 = jax.jit(functools.partial(rnn_forward_packed, num_classes=C))
    out_bf16 = jax.block_until_ready(fwd_bf16(x, packed_bf16))
    assert out_bf16.shape == (B, C), out_bf16.shape
    assert jnp.allclose(out_bf16, ref, atol=5e-2, rtol=5e-2), (
        float(jnp.max(jnp.abs(out_bf16 - ref))))

    # f32 path (tighter tolerance sanity check).
    packed_f32 = pack_params(params, compute_dtype=jnp.float32)
    out_f32 = jax.block_until_ready(
        rnn_forward_packed(x, packed_f32, num_classes=C))
    assert jnp.allclose(out_f32, ref, atol=5e-3, rtol=5e-3), (
        float(jnp.max(jnp.abs(out_f32 - ref))))

    print("KERNEL_OK")
</pallas_src>

<mosaic_0001>
module attributes {stable_mosaic.version = 11 : i64} {
  func.func @rnn_fc_kernel(%arg0: memref<5x8x256xf32, #tpu.memory_space<vmem>>, %arg1: memref<256x128xbf16, #tpu.memory_space<vmem>>, %arg2: memref<128x128xbf16, #tpu.memory_space<vmem>>, %arg3: memref<128x128xbf16, #tpu.memory_space<vmem>>, %arg4: memref<128x128xbf16, #tpu.memory_space<vmem>>, %arg5: memref<640x128xbf16, #tpu.memory_space<vmem>>, %arg6: memref<1x384xf32, #tpu.memory_space<vmem>>, %arg7: memref<8x128xf32, #tpu.memory_space<vmem>>) attributes {dimension_semantics = [], scalar_prefetch = 0 : i64, scratch_operands = 0 : i64, tpu.core_type = #tpu.core_type<tc>} {
    %c0 = arith.constant 0 : index
    %c0_0 = arith.constant 0 : index
    %0 = vector.load %arg6[%c0, %c0_0] : memref<1x384xf32, #tpu.memory_space<vmem>>, vector<1x128xf32>
    %c0_1 = arith.constant 0 : index
    %c128 = arith.constant 128 : index
    %1 = vector.load %arg6[%c0_1, %c128] : memref<1x384xf32, #tpu.memory_space<vmem>>, vector<1x128xf32>
    %2 = vector.shape_cast %1 : vector<1x128xf32> to vector<1x128xf32>
    %3 = vector.broadcast %2 : vector<1x128xf32> to vector<8x128xf32>
    %c0_2 = arith.constant 0 : index
    %c256 = arith.constant 256 : index
    %4 = vector.load %arg6[%c0_2, %c256] : memref<1x384xf32, #tpu.memory_space<vmem>>, vector<1x128xf32>
    %c0_3 = arith.constant 0 : index
    %c0_4 = arith.constant 0 : index
    %c0_5 = arith.constant 0 : index
    %5 = vector.load %arg0[%c0_3, %c0_4, %c0_5] : memref<5x8x256xf32, #tpu.memory_space<vmem>>, vector<5x8x256xf32>
    %6 = vector.shape_cast %5 : vector<5x8x256xf32> to vector<40x256xf32>
    %7 = arith.truncf %6 : vector<40x256xf32> to vector<40x256xbf16>
    %c0_6 = arith.constant 0 : index
    %c0_7 = arith.constant 0 : index
    %8 = vector.load %arg1[%c0_6, %c0_7] : memref<256x128xbf16, #tpu.memory_space<vmem>>, vector<256x128xbf16>
    %cst = arith.constant dense<0.000000e+00> : vector<40x128xf32>
    %9 = tpu.matmul %7, %8, %cst {dimension_numbers = #tpu.dot_dimension_numbers<[1], [0], [0], [1], [0, 0, 1, 1], [], []>} : vector<40x256xbf16>, vector<256x128xbf16>, vector<40x128xf32> -> vector<40x128xf32>
    %10 = vector.broadcast %0 : vector<1x128xf32> to vector<40x128xf32>
    %11 = arith.addf %9, %10 : vector<40x128xf32>
    %12 = vector.shape_cast %4 : vector<1x128xf32> to vector<1x128xf32>
    %13 = vector.broadcast %12 : vector<1x128xf32> to vector<8x128xf32>
    %14 = vector.extract_strided_slice %11 {offsets = [0, 0], sizes = [8, 128], strides = [1, 1]} : vector<40x128xf32> to vector<8x128xf32>
    %15 = math.tanh %14 : vector<8x128xf32>
    %16 = arith.truncf %15 : vector<8x128xf32> to vector<8x128xbf16>
    %c0_8 = arith.constant 0 : index
    %c0_9 = arith.constant 0 : index
    %17 = vector.load %arg3[%c0_8, %c0_9] : memref<128x128xbf16, #tpu.memory_space<vmem>>, vector<128x128xbf16>
    %cst_10 = arith.constant dense<0.000000e+00> : vector<8x128xf32>
    %18 = tpu.matmul %16, %17, %cst_10 {dimension_numbers = #tpu.dot_dimension_numbers<[1], [0], [0], [1], [0, 0, 1, 1], [], []>} : vector<8x128xbf16>, vector<128x128xbf16>, vector<8x128xf32> -> vector<8x128xf32>
    %19 = arith.addf %18, %3 : vector<8x128xf32>
    %20 = math.tanh %19 : vector<8x128xf32>
    %21 = arith.truncf %20 : vector<8x128xf32> to vector<8x128xbf16>
    %c0_11 = arith.constant 0 : index
    %c0_12 = arith.constant 0 : index
    %22 = vector.load %arg5[%c0_11, %c0_12] : memref<640x128xbf16, #tpu.memory_space<vmem>>, vector<128x128xbf16>
    %cst_13 = arith.constant dense<0.000000e+00> : vector<8x128xf32>
    %23 = tpu.matmul %21, %22, %cst_13 {dimension_numbers = #tpu.dot_dimension_numbers<[1], [0], [0], [1], [0, 0, 1, 1], [], []>} : vector<8x128xbf16>, vector<128x128xbf16>, vector<8x128xf32> -> vector<8x128xf32>
    %24 = arith.addf %13, %23 : vector<8x128xf32>
    %25 = arith.truncf %20 : vector<8x128xf32> to vector<8x128xbf16>
    %c0_14 = arith.constant 0 : index
    %c0_15 = arith.constant 0 : index
    %26 = vector.load %arg4[%c0_14, %c0_15] : memref<128x128xbf16, #tpu.memory_space<vmem>>, vector<128x128xbf16>
    %cst_16 = arith.constant dense<0.000000e+00> : vector<8x128xf32>
    %27 = tpu.matmul %25, %26, %cst_16 {dimension_numbers = #tpu.dot_dimension_numbers<[1], [0], [0], [1], [0, 0, 1, 1], [], []>} : vector<8x128xbf16>, vector<128x128xbf16>, vector<8x128xf32> -> vector<8x128xf32>
    %28 = vector.extract_strided_slice %11 {offsets = [8, 0], sizes = [8, 128], strides = [1, 1]} : vector<40x128xf32> to vector<8x128xf32>
    %29 = arith.truncf %15 : vector<8x128xf32> to vector<8x128xbf16>
    %c0_17 = arith.constant 0 : index
    %c0_18 = arith.constant 0 : index
    %30 = vector.load %arg2[%c0_17, %c0_18] : memref<128x128xbf16, #tpu.memory_space<vmem>>, vector<128x128xbf16>
    %cst_19 = arith.constant dense<0.000000e+00> : vector<8x128xf32>
    %31 = tpu.matmul %29, %30, %cst_19 {dimension_numbers = #tpu.dot_dimension_numbers<[1], [0], [0], [1], [0, 0, 1, 1], [], []>} : vector<8x128xbf16>, vector<128x128xbf16>, vector<8x128xf32> -> vector<8x128xf32>
    %32 = arith.addf %28, %31 : vector<8x128xf32>
    %33 = math.tanh %32 : vector<8x128xf32>
    %34 = arith.truncf %33 : vector<8x128xf32> to vector<8x128xbf16>
    %c0_20 = arith.constant 0 : index
    %c0_21 = arith.constant 0 : index
    %35 = vector.load %arg3[%c0_20, %c0_21] : memref<128x128xbf16, #tpu.memory_space<vmem>>, vector<128x128xbf16>
    %cst_22 = arith.constant dense<0.000000e+00> : vector<8x128xf32>
    %36 = tpu.matmul %34, %35, %cst_22 {dimension_numbers = #tpu.dot_dimension_numbers<[1], [0], [0], [1], [0, 0, 1, 1], [], []>} : vector<8x128xbf16>, vector<128x128xbf16>, vector<8x128xf32> -> vector<8x128xf32>
    %37 = arith.addf %36, %27 : vector<8x128xf32>
    %38 = arith.addf %37, %3 : vector<8x128xf32>
    %39 = math.tanh %38 : vector<8x128xf32>
    %40 = arith.truncf %39 : vector<8x128xf32> to vector<8x128xbf16>
    %c128_23 = arith.constant 128 : index
    %c0_24 = arith.constant 0 : index
    %41 = vector.load %arg5[%c128_23, %c0_24] : memref<640x128xbf16, #tpu.memory_space<vmem>>, vector<128x128xbf16>
    %cst_25 = arith.constant dense<0.000000e+00> : vector<8x128xf32>
    %42 = tpu.matmul %40, %41, %cst_25 {dimension_numbers = #tpu.dot_dimension_numbers<[1], [0], [0], [1], [0, 0, 1, 1], [], []>} : vector<8x128xbf16>, vector<128x128xbf16>, vector<8x128xf32> -> vector<8x128xf32>
    %43 = arith.addf %24, %42 : vector<8x128xf32>
    %44 = arith.truncf %39 : vector<8x128xf32> to vector<8x128xbf16>
    %c0_26 = arith.constant 0 : index
    %c0_27 = arith.constant 0 : index
    %45 = vector.load %arg4[%c0_26, %c0_27] : memref<128x128xbf16, #tpu.memory_space<vmem>>, vector<128x128xbf16>
    %cst_28 = arith.constant dense<0.000000e+00> : vector<8x128xf32>
    %46 = tpu.matmul %44, %45, %cst_28 {dimension_numbers = #tpu.dot_dimension_numbers<[1], [0], [0], [1], [0, 0, 1, 1], [], []>} : vector<8x128xbf16>, vector<128x128xbf16>, vector<8x128xf32> -> vector<8x128xf32>
    %47 = vector.extract_strided_slice %11 {offsets = [16, 0], sizes = [8, 128], strides = [1, 1]} : vector<40x128xf32> to vector<8x128xf32>
    %48 = arith.truncf %33 : vector<8x128xf32> to vector<8x128xbf16>
    %c0_29 = arith.constant 0 : index
    %c0_30 = arith.constant 0 : index
    %49 = vector.load %arg2[%c0_29, %c0_30] : memref<128x128xbf16, #tpu.memory_space<vmem>>, vector<128x128xbf16>
    %cst_31 = arith.constant dense<0.000000e+00> : vector<8x128xf32>
    %50 = tpu.matmul %48, %49, %cst_31 {dimension_numbers = #tpu.dot_dimension_numbers<[1], [0], [0], [1], [0, 0, 1, 1], [], []>} : vector<8x128xbf16>, vector<128x128xbf16>, vector<8x128xf32> -> vector<8x128xf32>
    %51 = arith.addf %47, %50 : vector<8x128xf32>
    %52 = math.tanh %51 : vector<8x128xf32>
    %53 = arith.truncf %52 : vector<8x128xf32> to vector<8x128xbf16>
    %c0_32 = arith.constant 0 : index
    %c0_33 = arith.constant 0 : index
    %54 = vector.load %arg3[%c0_32, %c0_33] : memref<128x128xbf16, #tpu.memory_space<vmem>>, vector<128x128xbf16>
    %cst_34 = arith.constant dense<0.000000e+00> : vector<8x128xf32>
    %55 = tpu.matmul %53, %54, %cst_34 {dimension_numbers = #tpu.dot_dimension_numbers<[1], [0], [0], [1], [0, 0, 1, 1], [], []>} : vector<8x128xbf16>, vector<128x128xbf16>, vector<8x128xf32> -> vector<8x128xf32>
    %56 = arith.addf %55, %46 : vector<8x128xf32>
    %57 = arith.addf %56, %3 : vector<8x128xf32>
    %58 = math.tanh %57 : vector<8x128xf32>
    %59 = arith.truncf %58 : vector<8x128xf32> to vector<8x128xbf16>
    %c256_35 = arith.constant 256 : index
    %c0_36 = arith.constant 0 : index
    %60 = vector.load %arg5[%c256_35, %c0_36] : memref<640x128xbf16, #tpu.memory_space<vmem>>, vector<128x128xbf16>
    %cst_37 = arith.constant dense<0.000000e+00> : vector<8x128xf32>
    %61 = tpu.matmul %59, %60, %cst_37 {dimension_numbers = #tpu.dot_dimension_numbers<[1], [0], [0], [1], [0, 0, 1, 1], [], []>} : vector<8x128xbf16>, vector<128x128xbf16>, vector<8x128xf32> -> vector<8x128xf32>
    %62 = arith.addf %43, %61 : vector<8x128xf32>
    %63 = arith.truncf %58 : vector<8x128xf32> to vector<8x128xbf16>
    %c0_38 = arith.constant 0 : index
    %c0_39 = arith.constant 0 : index
    %64 = vector.load %arg4[%c0_38, %c0_39] : memref<128x128xbf16, #tpu.memory_space<vmem>>, vector<128x128xbf16>
    %cst_40 = arith.constant dense<0.000000e+00> : vector<8x128xf32>
    %65 = tpu.matmul %63, %64, %cst_40 {dimension_numbers = #tpu.dot_dimension_numbers<[1], [0], [0], [1], [0, 0, 1, 1], [], []>} : vector<8x128xbf16>, vector<128x128xbf16>, vector<8x128xf32> -> vector<8x128xf32>
    %66 = vector.extract_strided_slice %11 {offsets = [24, 0], sizes = [8, 128], strides = [1, 1]} : vector<40x128xf32> to vector<8x128xf32>
    %67 = arith.truncf %52 : vector<8x128xf32> to vector<8x128xbf16>
    %c0_41 = arith.constant 0 : index
    %c0_42 = arith.constant 0 : index
    %68 = vector.load %arg2[%c0_41, %c0_42] : memref<128x128xbf16, #tpu.memory_space<vmem>>, vector<128x128xbf16>
    %cst_43 = arith.constant dense<0.000000e+00> : vector<8x128xf32>
    %69 = tpu.matmul %67, %68, %cst_43 {dimension_numbers = #tpu.dot_dimension_numbers<[1], [0], [0], [1], [0, 0, 1, 1], [], []>} : vector<8x128xbf16>, vector<128x128xbf16>, vector<8x128xf32> -> vector<8x128xf32>
    %70 = arith.addf %66, %69 : vector<8x128xf32>
    %71 = math.tanh %70 : vector<8x128xf32>
    %72 = arith.truncf %71 : vector<8x128xf32> to vector<8x128xbf16>
    %c0_44 = arith.constant 0 : index
    %c0_45 = arith.constant 0 : index
    %73 = vector.load %arg3[%c0_44, %c0_45] : memref<128x128xbf16, #tpu.memory_space<vmem>>, vector<128x128xbf16>
    %cst_46 = arith.constant dense<0.000000e+00> : vector<8x128xf32>
    %74 = tpu.matmul %72, %73, %cst_46 {dimension_numbers = #tpu.dot_dimension_numbers<[1], [0], [0], [1], [0, 0, 1, 1], [], []>} : vector<8x128xbf16>, vector<128x128xbf16>, vector<8x128xf32> -> vector<8x128xf32>
    %75 = arith.addf %74, %65 : vector<8x128xf32>
    %76 = arith.addf %75, %3 : vector<8x128xf32>
    %77 = math.tanh %76 : vector<8x128xf32>
    %78 = arith.truncf %77 : vector<8x128xf32> to vector<8x128xbf16>
    %c384 = arith.constant 384 : index
    %c0_47 = arith.constant 0 : index
    %79 = vector.load %arg5[%c384, %c0_47] : memref<640x128xbf16, #tpu.memory_space<vmem>>, vector<128x128xbf16>
    %cst_48 = arith.constant dense<0.000000e+00> : vector<8x128xf32>
    %80 = tpu.matmul %78, %79, %cst_48 {dimension_numbers = #tpu.dot_dimension_numbers<[1], [0], [0], [1], [0, 0, 1, 1], [], []>} : vector<8x128xbf16>, vector<128x128xbf16>, vector<8x128xf32> -> vector<8x128xf32>
    %81 = arith.addf %62, %80 : vector<8x128xf32>
    %82 = arith.truncf %77 : vector<8x128xf32> to vector<8x128xbf16>
    %c0_49 = arith.constant 0 : index
    %c0_50 = arith.constant 0 : index
    %83 = vector.load %arg4[%c0_49, %c0_50] : memref<128x128xbf16, #tpu.memory_space<vmem>>, vector<128x128xbf16>
    %cst_51 = arith.constant dense<0.000000e+00> : vector<8x128xf32>
    %84 = tpu.matmul %82, %83, %cst_51 {dimension_numbers = #tpu.dot_dimension_numbers<[1], [0], [0], [1], [0, 0, 1, 1], [], []>} : vector<8x128xbf16>, vector<128x128xbf16>, vector<8x128xf32> -> vector<8x128xf32>
    %85 = vector.extract_strided_slice %11 {offsets = [32, 0], sizes = [8, 128], strides = [1, 1]} : vector<40x128xf32> to vector<8x128xf32>
    %86 = arith.truncf %71 : vector<8x128xf32> to vector<8x128xbf16>
    %c0_52 = arith.constant 0 : index
    %c0_53 = arith.constant 0 : index
    %87 = vector.load %arg2[%c0_52, %c0_53] : memref<128x128xbf16, #tpu.memory_space<vmem>>, vector<128x128xbf16>
    %cst_54 = arith.constant dense<0.000000e+00> : vector<8x128xf32>
    %88 = tpu.matmul %86, %87, %cst_54 {dimension_numbers = #tpu.dot_dimension_numbers<[1], [0], [0], [1], [0, 0, 1, 1], [], []>} : vector<8x128xbf16>, vector<128x128xbf16>, vector<8x128xf32> -> vector<8x128xf32>
    %89 = arith.addf %85, %88 : vector<8x128xf32>
    %90 = math.tanh %89 : vector<8x128xf32>
    %91 = arith.truncf %90 : vector<8x128xf32> to vector<8x128xbf16>
    %c0_55 = arith.constant 0 : index
    %c0_56 = arith.constant 0 : index
    %92 = vector.load %arg3[%c0_55, %c0_56] : memref<128x128xbf16, #tpu.memory_space<vmem>>, vector<128x128xbf16>
    %cst_57 = arith.constant dense<0.000000e+00> : vector<8x128xf32>
    %93 = tpu.matmul %91, %92, %cst_57 {dimension_numbers = #tpu.dot_dimension_numbers<[1], [0], [0], [1], [0, 0, 1, 1], [], []>} : vector<8x128xbf16>, vector<128x128xbf16>, vector<8x128xf32> -> vector<8x128xf32>
    %94 = arith.addf %93, %84 : vector<8x128xf32>
    %95 = arith.addf %94, %3 : vector<8x128xf32>
    %96 = math.tanh %95 : vector<8x128xf32>
    %97 = arith.truncf %96 : vector<8x128xf32> to vector<8x128xbf16>
    %c512 = arith.constant 512 : index
    %c0_58 = arith.constant 0 : index
    %98 = vector.load %arg5[%c512, %c0_58] : memref<640x128xbf16, #tpu.memory_space<vmem>>, vector<128x128xbf16>
    %cst_59 = arith.constant dense<0.000000e+00> : vector<8x128xf32>
    %99 = tpu.matmul %97, %98, %cst_59 {dimension_numbers = #tpu.dot_dimension_numbers<[1], [0], [0], [1], [0, 0, 1, 1], [], []>} : vector<8x128xbf16>, vector<128x128xbf16>, vector<8x128xf32> -> vector<8x128xf32>
    %100 = arith.addf %81, %99 : vector<8x128xf32>
    %c0_60 = arith.constant 0 : index
    %c0_61 = arith.constant 0 : index
    %101 = vector.load %arg7[%c0_60, %c0_61] : memref<8x128xf32, #tpu.memory_space<vmem>>, vector<8x128xf32>
    tpu.vector_store %arg7[%c0_60, %c0_61], %100 {strides = array<i32>} : memref<8x128xf32, #tpu.memory_space<vmem>>, vector<8x128xf32>,
    return
  }
}

</mosaic_0001>

<llo_original>
// kernel: rnn_forward_packed.1
$region0: #{rnn_forward_packed.1}
  #allocation0 [shape = 'u32[]', space=smem, size = 0x4, offset = 0x4, fixed_abs, tag = 'smem constant byte address 0x4 - core index']
  #allocation1 [shape = 'u32[144,128]{1,0:T(1,128)}', space=vmem, size = 0x12000, scoped, tag = 'internal scratch']
  %s0 = inlined_call_operand.hbm [shape: f32[5,8,256], index: 0, kind: input, shape index: {}]
  %s1 = inlined_call_operand.hbm [shape: bf16[256,128], index: 1, kind: input, shape index: {}]
  %s2 = inlined_call_operand.hbm [shape: bf16[128,128], index: 2, kind: input, shape index: {}]
  %s3 = inlined_call_operand.hbm [shape: bf16[128,128], index: 3, kind: input, shape index: {}]
  %s4 = inlined_call_operand.hbm [shape: bf16[128,128], index: 4, kind: input, shape index: {}]
  %s5 = inlined_call_operand.hbm [shape: bf16[640,128], index: 5, kind: input, shape index: {}]
  %s6 = inlined_call_operand.vmem [shape: f32[1,384], index: 6, kind: input, shape index: {}]
  %s7 = inlined_call_operand.vmem [shape: f32[8,128], index: 7, kind: output, shape index: {}]
  %s8 = sld [smem:[#allocation0]]
  $region62: #{rnn_forward_packed.1} parent=0
    _
  %s10 = ssub.s32 1, %s8
  %s11 = scalar_select 0, %s10, %s8
  $region1: #{rnn_forward_packed.1} parent=0
    #allocation2 [shape = 'u8[40960]{0}', space=vmem, size = 0xa000, scoped, tag = 'input window, operand 0, single buffered']
    #allocation3 [shape = 's32[1]{0}', space=sflag, size = 0x4, scoped, tag = 'scoped memory for rnn_forward_packed.1']
    #allocation4 [shape = 'u8[65536]{0}', space=vmem, size = 0x10000, scoped, tag = 'input window, operand 1, single buffered']
    #allocation5 [shape = 's32[1]{0}', space=sflag, size = 0x4, scoped, tag = 'scoped memory for rnn_forward_packed.1']
    #allocation6 [shape = 'u8[32768]{0}', space=vmem, size = 0x8000, scoped, tag = 'input window, operand 2, single buffered']
    #allocation7 [shape = 'u8[32768]{0}', space=vmem, size = 0x8000, scoped, tag = 'input window, operand 3, single buffered']
    #allocation8 [shape = 's32[1]{0}', space=sflag, size = 0x4, scoped, tag = 'scoped memory for rnn_forward_packed.1']
    #allocation9 [shape = 'u8[32768]{0}', space=vmem, size = 0x8000, scoped, tag = 'input window, operand 4, single buffered']
    #allocation10 [shape = 'u8[163840]{0}', space=vmem, size = 0x28000, scoped, tag = 'input window, operand 5, single buffered']
    #allocation11 [shape = 's32[1]{0}', space=sflag, size = 0x4, scoped, tag = 'scoped memory for rnn_forward_packed.1']
    %12 = vsyncpa [#allocation3], 0
    %13 = vsyncpa [#allocation5], 0
    %14 = vsyncpa [#allocation8], 0
    %15 = vsyncpa [#allocation11], 0
    // Predicated region
    $region2: #{rnn_forward_packed.1} parent=1 // pred_check
      _
    $region3: #{rnn_forward_packed.1} parent=1 // pred_check_branch
      %17 = sbr.rel (0) target = $region5
    $region4: #{rnn_forward_packed.1} parent=1 // pred_region
      %s19 = ssub.s32 1280, 1280
      %20 = vsyncadd [#allocation3], %s19
      %s21 = sshll.u32 [#allocation2], 4
      %s22 = int_to_ptr.vmem [resolvable:$true] %s21
      %27 = dma.hbm_to_vmem [thread:$0]  %s0, 1280, %s22, [#allocation3], 256, 256, 16
    $region5: #{rnn_forward_packed.1} parent=1 // pred_fallthru
      _
    // Predicated region
    $region6: #{rnn_forward_packed.1} parent=1 // pred_check
      _
    $region7: #{rnn_forward_packed.1} parent=1 // pred_check_branch
      %29 = sbr.rel (0) target = $region9
    $region8: #{rnn_forward_packed.1} parent=1 // pred_region
      %s31 = ssub.s32 2048, 2048
      %32 = vsyncadd [#allocation5], %s31
      %s33 = sshll.u32 [#allocation4], 4
      %s34 = int_to_ptr.vmem [resolvable:$true] %s33
      %39 = dma.hbm_to_vmem [thread:$0]  %s1, 2048, %s34, [#allocation5], 64, 64, 4
    $region9: #{rnn_forward_packed.1} parent=1 // pred_fallthru
      _
    // Predicated region
    $region10: #{rnn_forward_packed.1} parent=1 // pred_check
      _
    $region11: #{rnn_forward_packed.1} parent=1 // pred_check_branch
      %41 = sbr.rel (0) target = $region13
    $region12: #{rnn_forward_packed.1} parent=1 // pred_region
      %s43 = ssub.s32 1024, 1024
      %44 = vsyncadd [#allocation5], %s43
      %s45 = sshll.u32 [#allocation6], 4
      %s46 = int_to_ptr.vmem [resolvable:$true] %s45
      %51 = dma.hbm_to_vmem [thread:$0]  %s2, 1024, %s46, [#allocation5], 64, 64, 4
    $region13: #{rnn_forward_packed.1} parent=1 // pred_fallthru
      _
    // Predicated region
    $region14: #{rnn_forward_packed.1} parent=1 // pred_check
      _
    $region15: #{rnn_forward_packed.1} parent=1 // pred_check_branch
      %53 = sbr.rel (0) target = $region17
    $region16: #{rnn_forward_packed.1} parent=1 // pred_region
      %s55 = ssub.s32 1024, 1024
      %56 = vsyncadd [#allocation8], %s55
      %s57 = sshll.u32 [#allocation7], 4
      %s58 = int_to_ptr.vmem [resolvable:$true] %s57
      %63 = dma.hbm_to_vmem [thread:$0]  %s3, 1024, %s58, [#allocation8], 64, 64, 4
    $region17: #{rnn_forward_packed.1} parent=1 // pred_fallthru
      _
    // Predicated region
    $region18: #{rnn_forward_packed.1} parent=1 // pred_check
      _
    $region19: #{rnn_forward_packed.1} parent=1 // pred_check_branch
      %65 = sbr.rel (0) target = $region21
    $region20: #{rnn_forward_packed.1} parent=1 // pred_region
      %s67 = ssub.s32 1024, 1024
      %68 = vsyncadd [#allocation8], %s67
      %s69 = sshll.u32 [#allocation9], 4
      %s70 = int_to_ptr.vmem [resolvable:$true] %s69
      %75 = dma.hbm_to_vmem [thread:$0]  %s4, 1024, %s70, [#allocation8], 64, 64, 4
    $region21: #{rnn_forward_packed.1} parent=1 // pred_fallthru
      _
    // Predicated region
    $region22: #{rnn_forward_packed.1} parent=1 // pred_check
      _
    $region23: #{rnn_forward_packed.1} parent=1 // pred_check_branch
      %77 = sbr.rel (0) target = $region25
    $region24: #{rnn_forward_packed.1} parent=1 // pred_region
      %s79 = ssub.s32 5120, 5120
      %80 = vsyncadd [#allocation11], %s79
      %s81 = sshll.u32 [#allocation10], 4
      %s82 = int_to_ptr.vmem [resolvable:$true] %s81
      %87 = dma.hbm_to_vmem [thread:$0]  %s5, 5120, %s82, [#allocation11], 64, 64, 4
    $region25: #{rnn_forward_packed.1} parent=1 // pred_fallthru
      _
    // Predicated region
    $region26: #{rnn_forward_packed.1} parent=1 // pred_check
      _
    $region27: #{rnn_forward_packed.1} parent=1 // pred_check_branch
      %89 = sbr.rel (0) target = $region29
    $region28: #{rnn_forward_packed.1} parent=1 // pred_region
      _
    $region29: #{rnn_forward_packed.1} parent=1 // pred_fallthru
      _
    // Predicated region
    $region30: #{rnn_forward_packed.1} parent=1 // pred_check
      _
    $region31: #{rnn_forward_packed.1} parent=1 // pred_check_branch
      %91 = sbr.rel (0) target = $region33
    $region32: #{rnn_forward_packed.1} parent=1 // pred_region
      %92 = dma.done [#allocation3], 1280
    $region33: #{rnn_forward_packed.1} parent=1 // pred_fallthru
      _
    // Predicated region
    $region34: #{rnn_forward_packed.1} parent=1 // pred_check
      _
    $region35: #{rnn_forward_packed.1} parent=1 // pred_check_branch
      %94 = sbr.rel (0) target = $region37
    $region36: #{rnn_forward_packed.1} parent=1 // pred_region
      %95 = dma.done [#allocation5], 2048
    $region37: #{rnn_forward_packed.1} parent=1 // pred_fallthru
      _
    // Predicated region
    $region38: #{rnn_forward_packed.1} parent=1 // pred_check
      _
    $region39: #{rnn_forward_packed.1} parent=1 // pred_check_branch
      %97 = sbr.rel (0) target = $region41
    $region40: #{rnn_forward_packed.1} parent=1 // pred_region
      %98 = dma.done [#allocation5], 1024
    $region41: #{rnn_forward_packed.1} parent=1 // pred_fallthru
      _
    // Predicated region
    $region42: #{rnn_forward_packed.1} parent=1 // pred_check
      _
    $region43: #{rnn_forward_packed.1} parent=1 // pred_check_branch
      %100 = sbr.rel (0) target = $region45
    $region44: #{rnn_forward_packed.1} parent=1 // pred_region
      %101 = dma.done [#allocation8], 1024
    $region45: #{rnn_forward_packed.1} parent=1 // pred_fallthru
      _
    // Predicated region
    $region46: #{rnn_forward_packed.1} parent=1 // pred_check
      _
    $region47: #{rnn_forward_packed.1} parent=1 // pred_check_branch
      %103 = sbr.rel (0) target = $region49
    $region48: #{rnn_forward_packed.1} parent=1 // pred_region
      %104 = dma.done [#allocation8], 1024
    $region49: #{rnn_forward_packed.1} parent=1 // pred_fallthru
      _
    // Predicated region
    $region50: #{rnn_forward_packed.1} parent=1 // pred_check
      _
    $region51: #{rnn_forward_packed.1} parent=1 // pred_check_branch
      %106 = sbr.rel (0) target = $region53
    $region52: #{rnn_forward_packed.1} parent=1 // pred_region
      %107 = dma.done [#allocation11], 5120
    $region53: #{rnn_forward_packed.1} parent=1 // pred_fallthru
      _
    %v109 = vld [vmem:[%s6] sm:$0x1]
    %v110 = vld [vmem:[%s6 + $0x1] sm:$0x1]
    %v112 = vlaneseq
    %v113 = vshrl.u32 %v112, 7
    %v114 = vsub.s32 0, %v113
    %v115 = vrot.slane %v110, %v114
    %v117 = vld [vmem:[%s6 + $0x2] sm:$0x1]
    %v118 = vld [vmem:[#allocation2] sm:$0xff]
    %v119 = vld [vmem:[#allocation2 + $0x8] sm:$0xff]
    %v120 = vld [vmem:[#allocation2 + $0x10] sm:$0xff]
    %v121 = vld [vmem:[#allocation2 + $0x18] sm:$0xff]
    %v122 = vld [vmem:[#allocation2 + $0x20] sm:$0xff]
    %v123 = vld [vmem:[#allocation2 + $0x28] sm:$0xff]
    %v124 = vld [vmem:[#allocation2 + $0x30] sm:$0xff]
    %v125 = vld [vmem:[#allocation2 + $0x38] sm:$0xff]
    %v126 = vld [vmem:[#allocation2 + $0x40] sm:$0xff]
    %v127 = vld [vmem:[#allocation2 + $0x48] sm:$0xff]
    %v128 = vpack.c.bf16 %v120, %v118
    %v129 = vpack.c.bf16 %v121, %v119
    %v130 = vpack.c.bf16 %v124, %v122
    %v131 = vpack.c.bf16 %v125, %v123
    %v132 = vpack.c.bf16 %v126, %v126
    %v133 = vpack.c.bf16 %v127, %v127
    %v134 = vld [vmem:[#allocation4] sm:$0xf]
    %v135 = vld [vmem:[#allocation4 + $0x4] sm:$0xf]
    %v136 = vld [vmem:[#allocation4 + $0x8] sm:$0xf]
    %v137 = vld [vmem:[#allocation4 + $0xc] sm:$0xf]
    %v138 = vld [vmem:[#allocation4 + $0x10] sm:$0xf]
    %v139 = vld [vmem:[#allocation4 + $0x14] sm:$0xf]
    %v140 = vld [vmem:[#allocation4 + $0x18] sm:$0xf]
    %v141 = vld [vmem:[#allocation4 + $0x1c] sm:$0xf]
    %v142 = vld [vmem:[#allocation4 + $0x20] sm:$0xf]
    %v143 = vld [vmem:[#allocation4 + $0x24] sm:$0xf]
    %v144 = vld [vmem:[#allocation4 + $0x28] sm:$0xf]
    %v145 = vld [vmem:[#allocation4 + $0x2c] sm:$0xf]
    %v146 = vld [vmem:[#allocation4 + $0x30] sm:$0xf]
    %v147 = vld [vmem:[#allocation4 + $0x34] sm:$0xf]
    %v148 = vld [vmem:[#allocation4 + $0x38] sm:$0xf]
    %v149 = vld [vmem:[#allocation4 + $0x3c] sm:$0xf]
    %v150 = vld [vmem:[#allocation4 + $0x40] sm:$0xf]
    %v151 = vld [vmem:[#allocation4 + $0x44] sm:$0xf]
    %v152 = vld [vmem:[#allocation4 + $0x48] sm:$0xf]
    %v153 = vld [vmem:[#allocation4 + $0x4c] sm:$0xf]
    %v154 = vld [vmem:[#allocation4 + $0x50] sm:$0xf]
    %v155 = vld [vmem:[#allocation4 + $0x54] sm:$0xf]
    %v156 = vld [vmem:[#allocation4 + $0x58] sm:$0xf]
    %v157 = vld [vmem:[#allocation4 + $0x5c] sm:$0xf]
    %v158 = vld [vmem:[#allocation4 + $0x60] sm:$0xf]
    %v159 = vld [vmem:[#allocation4 + $0x64] sm:$0xf]
    %v160 = vld [vmem:[#allocation4 + $0x68] sm:$0xf]
    %v161 = vld [vmem:[#allocation4 + $0x6c] sm:$0xf]
    %v162 = vld [vmem:[#allocation4 + $0x70] sm:$0xf]
    %v163 = vld [vmem:[#allocation4 + $0x74] sm:$0xf]
    %v164 = vld [vmem:[#allocation4 + $0x78] sm:$0xf]
    %v165 = vld [vmem:[#allocation4 + $0x7c] sm:$0xf]
    %v167 = vlaneseq
    %v168 = vshrl.u32 %v167, 7
    %v169 = vsub.s32 0, %v168
    %v170 = vrot.slane %v109, %v169
    %v204 = vunpack.c.l.b16 %v134
    %v205 = vunpack.c.l.b16 %v135
    %v206 = vunpack.c.l.b16 %v136
    %v207 = vunpack.c.l.b16 %v137
    %v208 = vunpack.c.l.b16 %v138
    %v209 = vunpack.c.l.b16 %v139
    %v210 = vunpack.c.l.b16 %v140
    %v211 = vunpack.c.l.b16 %v141
    %v212 = vunpack.c.l.b16 %v142
    %v213 = vunpack.c.l.b16 %v143
    %v214 = vunpack.c.l.b16 %v144
    %v215 = vunpack.c.l.b16 %v145
    %v216 = vunpack.c.l.b16 %v146
    %v217 = vunpack.c.l.b16 %v147
    %v218 = vunpack.c.l.b16 %v148
    %v219 = vunpack.c.l.b16 %v149
    %v220 = vunpack.c.l.b16 %v150
    %v221 = vunpack.c.l.b16 %v151
    %v222 = vunpack.c.l.b16 %v152
    %v223 = vunpack.c.l.b16 %v153
    %v224 = vunpack.c.l.b16 %v154
    %v225 = vunpack.c.l.b16 %v155
    %v226 = vunpack.c.l.b16 %v156
    %v227 = vunpack.c.l.b16 %v157
    %v228 = vunpack.c.l.b16 %v158
    %v229 = vunpack.c.l.b16 %v159
    %v230 = vunpack.c.l.b16 %v160
    %v231 = vunpack.c.l.b16 %v161
    %v232 = vunpack.c.l.b16 %v162
    %v233 = vunpack.c.l.b16 %v163
    %v234 = vunpack.c.l.b16 %v164
    %v235 = vunpack.c.l.b16 %v165
    %v236 = vpack.c.b16 %v205, %v204
    %v237 = vpack.c.b16 %v207, %v206
    %v238 = vpack.c.b16 %v209, %v208
    %v239 = vpack.c.b16 %v211, %v210
    %v240 = vpack.c.b16 %v213, %v212
    %v241 = vpack.c.b16 %v215, %v214
    %v242 = vpack.c.b16 %v217, %v216
    %v243 = vpack.c.b16 %v219, %v218
    %v244 = vpack.c.b16 %v221, %v220
    %v245 = vpack.c.b16 %v223, %v222
    %v246 = vpack.c.b16 %v225, %v224
    %v247 = vpack.c.b16 %v227, %v226
    %v248 = vpack.c.b16 %v229, %v228
    %v249 = vpack.c.b16 %v231, %v230
    %v250 = vpack.c.b16 %v233, %v232
    %v251 = vpack.c.b16 %v235, %v234
    %268 = vmatprep.subr.bf16.mxu0 0
    %269 = vmatpush1.bf16.msra.mxu0 %v236
    %270 = vmatprep.subr.bf16.mxu0 0
    %271 = vmatpush1.bf16.msra.mxu0 %v237
    %272 = vmatprep.subr.bf16.mxu0 0
    %273 = vmatpush1.bf16.msra.mxu0 %v238
    %274 = vmatprep.subr.bf16.mxu0 0
    %275 = vmatpush1.bf16.msra.mxu0 %v239
    %276 = vmatprep.subr.bf16.mxu0 0
    %277 = vmatpush1.bf16.msra.mxu0 %v240
    %278 = vmatprep.subr.bf16.mxu0 0
    %279 = vmatpush1.bf16.msra.mxu0 %v241
    %280 = vmatprep.subr.bf16.mxu0 0
    %281 = vmatpush1.bf16.msra.mxu0 %v242
    %282 = vmatprep.subr.bf16.mxu0 0
    %283 = vmatpush1.bf16.msra.mxu0 %v243
    %284 = vmatprep.subr.bf16.mxu0 0
    %285 = vmatpush1.bf16.msra.mxu0 %v244
    %286 = vmatprep.subr.bf16.mxu0 0
    %287 = vmatpush1.bf16.msra.mxu0 %v245
    %288 = vmatprep.subr.bf16.mxu0 0
    %289 = vmatpush1.bf16.msra.mxu0 %v246
    %290 = vmatprep.subr.bf16.mxu0 0
    %291 = vmatpush1.bf16.msra.mxu0 %v247
    %292 = vmatprep.subr.bf16.mxu0 0
    %293 = vmatpush1.bf16.msra.mxu0 %v248
    %294 = vmatprep.subr.bf16.mxu0 0
    %295 = vmatpush1.bf16.msra.mxu0 %v249
    %296 = vmatprep.subr.bf16.mxu0 0
    %297 = vmatpush1.bf16.msra.mxu0 %v250
    %298 = vmatprep.subr.bf16.mxu0 0
    %299 = vmatpush1.bf16.msra.mxu0 %v251
    %300 = vmatprep.mubr.bf16.mxu0 %v129
    %301 = vmatmul.mubr.bf16.gmra.mrb[0].mxu0 %v128
    %v302 = vpop.f32.mrb[0].mxu0
    %v303 = vadd.f32 %v170, %v302
    %v304 = vpop.f32.mrb[0].mxu0
    %v305 = vpop.f32.mrb[0].mxu0
    %v306 = vadd.f32 %v170, %v305
    %v307 = vpop.f32.mrb[0].mxu0
    %308 = vmatprep.mubr.bf16.mxu0 %v131
    %309 = vmatmul.mubr.bf16.gmra.mrb[0].mxu0 %v130
    %v310 = vpop.f32.mrb[0].mxu0
    %v311 = vadd.f32 %v170, %v310
    %v312 = vpop.f32.mrb[0].mxu0
    %v313 = vpop.f32.mrb[0].mxu0
    %v314 = vadd.f32 %v170, %v313
    %v315 = vpop.f32.mrb[0].mxu0
    %316 = vmatprep.mubr.bf16.mxu0 %v133
    %317 = vmatmul.mubr.bf16.gmra.mrb[0].mxu0 %v132
    %v318 = vpop.f32.mrb[0].mxu0
    %v319 = vadd.f32 %v170, %v318
    %v320 = vpop.f32.mrb[0].mxu0
    %v321 = vpop.f32.mrb[0].mxu0
    %v322 = vpop.f32.mrb[0].mxu0
    %323 = vdwg.mxu0
    %v325 = vlaneseq
    %v326 = vshrl.u32 %v325, 7
    %v327 = vsub.s32 0, %v326
    %v328 = vrot.slane %v117, %v327
    %v330 = vtanh.pop %v303
    %v331 = vpack.c.bf16 %v330, %v330
    %v332 = vld [vmem:[#allocation7] sm:$0xf]
    %v333 = vld [vmem:[#allocation7 + $0x4] sm:$0xf]
    %v334 = vld [vmem:[#allocation7 + $0x8] sm:$0xf]
    %v335 = vld [vmem:[#allocation7 + $0xc] sm:$0xf]
    %v336 = vld [vmem:[#allocation7 + $0x10] sm:$0xf]
    %v337 = vld [vmem:[#allocation7 + $0x14] sm:$0xf]
    %v338 = vld [vmem:[#allocation7 + $0x18] sm:$0xf]
    %v339 = vld [vmem:[#allocation7 + $0x1c] sm:$0xf]
    %v340 = vld [vmem:[#allocation7 + $0x20] sm:$0xf]
    %v341 = vld [vmem:[#allocation7 + $0x24] sm:$0xf]
    %v342 = vld [vmem:[#allocation7 + $0x28] sm:$0xf]
    %v343 = vld [vmem:[#allocation7 + $0x2c] sm:$0xf]
    %v344 = vld [vmem:[#allocation7 + $0x30] sm:$0xf]
    %v345 = vld [vmem:[#allocation7 + $0x34] sm:$0xf]
    %v346 = vld [vmem:[#allocation7 + $0x38] sm:$0xf]
    %v347 = vld [vmem:[#allocation7 + $0x3c] sm:$0xf]
    %v364 = vunpack.c.l.b16 %v332
    %v365 = vunpack.c.l.b16 %v333
    %v366 = vunpack.c.l.b16 %v334
    %v367 = vunpack.c.l.b16 %v335
    %v368 = vunpack.c.l.b16 %v336
    %v369 = vunpack.c.l.b16 %v337
    %v370 = vunpack.c.l.b16 %v338
    %v371 = vunpack.c.l.b16 %v339
    %v372 = vunpack.c.l.b16 %v340
    %v373 = vunpack.c.l.b16 %v341
    %v374 = vunpack.c.l.b16 %v342
    %v375 = vunpack.c.l.b16 %v343
    %v376 = vunpack.c.l.b16 %v344
    %v377 = vunpack.c.l.b16 %v345
    %v378 = vunpack.c.l.b16 %v346
    %v379 = vunpack.c.l.b16 %v347
    %v380 = vpack.c.b16 %v365, %v364
    %v381 = vpack.c.b16 %v367, %v366
    %v382 = vpack.c.b16 %v369, %v368
    %v383 = vpack.c.b16 %v371, %v370
    %v384 = vpack.c.b16 %v373, %v372
    %v385 = vpack.c.b16 %v375, %v374
    %v386 = vpack.c.b16 %v377, %v376
    %v387 = vpack.c.b16 %v379, %v378
    %396 = vmatprep.subr.bf16.mxu0 0
    %397 = vmatpush1.bf16.msra.mxu0 %v380
    %398 = vmatprep.subr.bf16.mxu0 0
    %399 = vmatpush1.bf16.msra.mxu0 %v381
    %400 = vmatprep.subr.bf16.mxu0 0
    %401 = vmatpush1.bf16.msra.mxu0 %v382
    %402 = vmatprep.subr.bf16.mxu0 0
    %403 = vmatpush1.bf16.msra.mxu0 %v383
    %404 = vmatprep.subr.bf16.mxu0 0
    %405 = vmatpush1.bf16.msra.mxu0 %v384
    %406 = vmatprep.subr.bf16.mxu0 0
    %407 = vmatpush1.bf16.msra.mxu0 %v385
    %408 = vmatprep.subr.bf16.mxu0 0
    %409 = vmatpush1.bf16.msra.mxu0 %v386
    %410 = vmatprep.subr.bf16.mxu0 0
    %411 = vmatpush1.bf16.msra.mxu0 %v387
    %412 = vmatprep.subr.bf16.mxu0 0
    %413 = vmatpush1.bf16.msra.mxu0 0
    %414 = vmatprep.subr.bf16.mxu0 0
    %415 = vmatpush1.bf16.msra.mxu0 0
    %416 = vmatprep.subr.bf16.mxu0 0
    %417 = vmatpush1.bf16.msra.mxu0 0
    %418 = vmatprep.subr.bf16.mxu0 0
    %419 = vmatpush1.bf16.msra.mxu0 0
    %420 = vmatprep.subr.bf16.mxu0 0
    %421 = vmatpush1.bf16.msra.mxu0 0
    %422 = vmatprep.subr.bf16.mxu0 0
    %423 = vmatpush1.bf16.msra.mxu0 0
    %424 = vmatprep.subr.bf16.mxu0 0
    %425 = vmatpush1.bf16.msra.mxu0 0
    %426 = vmatprep.subr.bf16.mxu0 0
    %427 = vmatpush1.bf16.msra.mxu0 0
    %428 = vmatprep.mubr.bf16.mxu0 0
    %429 = vmatmul.mubr.bf16.gmra.mrb[0].mxu0 %v331
    %v430 = vpop.f32.mrb[0].mxu0
    %v431 = vadd.f32 %v115, %v430
    %v432 = vpop.f32.mrb[0].mxu0
    %v433 = vpop.f32.mrb[0].mxu0
    %v434 = vpop.f32.mrb[0].mxu0
    %435 = vdwg.mxu0
    %v436 = vtanh.pop %v431
    %v437 = vpack.c.bf16 %v436, %v436
    %v438 = vld [vmem:[#allocation10] sm:$0xf]
    %v439 = vld [vmem:[#allocation10 + $0x4] sm:$0xf]
    %v440 = vld [vmem:[#allocation10 + $0x8] sm:$0xf]
    %v441 = vld [vmem:[#allocation10 + $0xc] sm:$0xf]
    %v442 = vld [vmem:[#allocation10 + $0x10] sm:$0xf]
    %v443 = vld [vmem:[#allocation10 + $0x14] sm:$0xf]
    %v444 = vld [vmem:[#allocation10 + $0x18] sm:$0xf]
    %v445 = vld [vmem:[#allocation10 + $0x1c] sm:$0xf]
    %v446 = vld [vmem:[#allocation10 + $0x20] sm:$0xf]
    %v447 = vld [vmem:[#allocation10 + $0x24] sm:$0xf]
    %v448 = vld [vmem:[#allocation10 + $0x28] sm:$0xf]
    %v449 = vld [vmem:[#allocation10 + $0x2c] sm:$0xf]
    %v450 = vld [vmem:[#allocation10 + $0x30] sm:$0xf]
    %v451 = vld [vmem:[#allocation10 + $0x34] sm:$0xf]
    %v452 = vld [vmem:[#allocation10 + $0x38] sm:$0xf]
    %v453 = vld [vmem:[#allocation10 + $0x3c] sm:$0xf]
    %v470 = vunpack.c.l.b16 %v438
    %v471 = vunpack.c.l.b16 %v439
    %v472 = vunpack.c.l.b16 %v440
    %v473 = vunpack.c.l.b16 %v441
    %v474 = vunpack.c.l.b16 %v442
    %v475 = vunpack.c.l.b16 %v443
    %v476 = vunpack.c.l.b16 %v444
    %v477 = vunpack.c.l.b16 %v445
    %v478 = vunpack.c.l.b16 %v446
    %v479 = vunpack.c.l.b16 %v447
    %v480 = vunpack.c.l.b16 %v448
    %v481 = vunpack.c.l.b16 %v449
    %v482 = vunpack.c.l.b16 %v450
    %v483 = vunpack.c.l.b16 %v451
    %v484 = vunpack.c.l.b16 %v452
    %v485 = vunpack.c.l.b16 %v453
    %v486 = vpack.c.b16 %v471, %v470
    %v487 = vpack.c.b16 %v473, %v472
    %v488 = vpack.c.b16 %v475, %v474
    %v489 = vpack.c.b16 %v477, %v476
    %v490 = vpack.c.b16 %v479, %v478
    %v491 = vpack.c.b16 %v481, %v480
    %v492 = vpack.c.b16 %v483, %v482
    %v493 = vpack.c.b16 %v485, %v484
    %502 = vmatprep.subr.bf16.mxu0 0
    %503 = vmatpush1.bf16.msra.mxu0 %v486
    %504 = vmatprep.subr.bf16.mxu0 0
    %505 = vmatpush1.bf16.msra.mxu0 %v487
    %506 = vmatprep.subr.bf16.mxu0 0
    %507 = vmatpush1.bf16.msra.mxu0 %v488
    %508 = vmatprep.subr.bf16.mxu0 0
    %509 = vmatpush1.bf16.msra.mxu0 %v489
    %510 = vmatprep.subr.bf16.mxu0 0
    %511 = vmatpush1.bf16.msra.mxu0 %v490
    %512 = vmatprep.subr.bf16.mxu0 0
    %513 = vmatpush1.bf16.msra.mxu0 %v491
    %514 = vmatprep.subr.bf16.mxu0 0
    %515 = vmatpush1.bf16.msra.mxu0 %v492
    %516 = vmatprep.subr.bf16.mxu0 0
    %517 = vmatpush1.bf16.msra.mxu0 %v493
    %518 = vmatprep.subr.bf16.mxu0 0
    %519 = vmatpush1.bf16.msra.mxu0 0
    %520 = vmatprep.subr.bf16.mxu0 0
    %521 = vmatpush1.bf16.msra.mxu0 0
    %522 = vmatprep.subr.bf16.mxu0 0
    %523 = vmatpush1.bf16.msra.mxu0 0
    %524 = vmatprep.subr.bf16.mxu0 0
    %525 = vmatpush1.bf16.msra.mxu0 0
    %526 = vmatprep.subr.bf16.mxu0 0
    %527 = vmatpush1.bf16.msra.mxu0 0
    %528 = vmatprep.subr.bf16.mxu0 0
    %529 = vmatpush1.bf16.msra.mxu0 0
    %530 = vmatprep.subr.bf16.mxu0 0
    %531 = vmatpush1.bf16.msra.mxu0 0
    %532 = vmatprep.subr.bf16.mxu0 0
    %533 = vmatpush1.bf16.msra.mxu0 0
    %534 = vmatprep.mubr.bf16.mxu0 0
    %535 = vmatmul.mubr.bf16.gmra.mrb[0].mxu0 %v437
    %v536 = vpop.f32.mrb[0].mxu0
    %v537 = vadd.f32 0.0, %v536
    %v538 = vpop.f32.mrb[0].mxu0
    %v539 = vpop.f32.mrb[0].mxu0
    %v540 = vpop.f32.mrb[0].mxu0
    %541 = vdwg.mxu0
    %v542 = vadd.f32 %v328, %v537
    %v543 = vld [vmem:[#allocation9] sm:$0xf]
    %v544 = vld [vmem:[#allocation9 + $0x4] sm:$0xf]
    %v545 = vld [vmem:[#allocation9 + $0x8] sm:$0xf]
    %v546 = vld [vmem:[#allocation9 + $0xc] sm:$0xf]
    %v547 = vld [vmem:[#allocation9 + $0x10] sm:$0xf]
    %v548 = vld [vmem:[#allocation9 + $0x14] sm:$0xf]
    %v549 = vld [vmem:[#allocation9 + $0x18] sm:$0xf]
    %v550 = vld [vmem:[#allocation9 + $0x1c] sm:$0xf]
    %v551 = vld [vmem:[#allocation9 + $0x20] sm:$0xf]
    %v552 = vld [vmem:[#allocation9 + $0x24] sm:$0xf]
    %v553 = vld [vmem:[#allocation9 + $0x28] sm:$0xf]
    %v554 = vld [vmem:[#allocation9 + $0x2c] sm:$0xf]
    %v555 = vld [vmem:[#allocation9 + $0x30] sm:$0xf]
    %v556 = vld [vmem:[#allocation9 + $0x34] sm:$0xf]
    %v557 = vld [vmem:[#allocation9 + $0x38] sm:$0xf]
    %v558 = vld [vmem:[#allocation9 + $0x3c] sm:$0xf]
    %v575 = vunpack.c.l.b16 %v543
    %v576 = vunpack.c.l.b16 %v544
    %v577 = vunpack.c.l.b16 %v545
    %v578 = vunpack.c.l.b16 %v546
    %v579 = vunpack.c.l.b16 %v547
    %v580 = vunpack.c.l.b16 %v548
    %v581 = vunpack.c.l.b16 %v549
    %v582 = vunpack.c.l.b16 %v550
    %v583 = vunpack.c.l.b16 %v551
    %v584 = vunpack.c.l.b16 %v552
    %v585 = vunpack.c.l.b16 %v553
    %v586 = vunpack.c.l.b16 %v554
    %v587 = vunpack.c.l.b16 %v555
    %v588 = vunpack.c.l.b16 %v556
    %v589 = vunpack.c.l.b16 %v557
    %v590 = vunpack.c.l.b16 %v558
    %v591 = vpack.c.b16 %v576, %v575
    %v592 = vpack.c.b16 %v578, %v577
    %v593 = vpack.c.b16 %v580, %v579
    %v594 = vpack.c.b16 %v582, %v581
    %v595 = vpack.c.b16 %v584, %v583
    %v596 = vpack.c.b16 %v586, %v585
    %v597 = vpack.c.b16 %v588, %v587
    %v598 = vpack.c.b16 %v590, %v589
    %607 = vmatprep.subr.bf16.mxu0 0
    %608 = vmatpush1.bf16.msra.mxu0 %v591
    %609 = vmatprep.subr.bf16.mxu0 0
    %610 = vmatpush1.bf16.msra.mxu0 %v592
    %611 = vmatprep.subr.bf16.mxu0 0
    %612 = vmatpush1.bf16.msra.mxu0 %v593
    %613 = vmatprep.subr.bf16.mxu0 0
    %614 = vmatpush1.bf16.msra.mxu0 %v594
    %615 = vmatprep.subr.bf16.mxu0 0
    %616 = vmatpush1.bf16.msra.mxu0 %v595
    %617 = vmatprep.subr.bf16.mxu0 0
    %618 = vmatpush1.bf16.msra.mxu0 %v596
    %619 = vmatprep.subr.bf16.mxu0 0
    %620 = vmatpush1.bf16.msra.mxu0 %v597
    %621 = vmatprep.subr.bf16.mxu0 0
    %622 = vmatpush1.bf16.msra.mxu0 %v598
    %623 = vmatprep.subr.bf16.mxu0 0
    %624 = vmatpush1.bf16.msra.mxu0 0
    %625 = vmatprep.subr.bf16.mxu0 0
    %626 = vmatpush1.bf16.msra.mxu0 0
    %627 = vmatprep.subr.bf16.mxu0 0
    %628 = vmatpush1.bf16.msra.mxu0 0
    %629 = vmatprep.subr.bf16.mxu0 0
    %630 = vmatpush1.bf16.msra.mxu0 0
    %631 = vmatprep.subr.bf16.mxu0 0
    %632 = vmatpush1.bf16.msra.mxu0 0
    %633 = vmatprep.subr.bf16.mxu0 0
    %634 = vmatpush1.bf16.msra.mxu0 0
    %635 = vmatprep.subr.bf16.mxu0 0
    %636 = vmatpush1.bf16.msra.mxu0 0
    %637 = vmatprep.subr.bf16.mxu0 0
    %638 = vmatpush1.bf16.msra.mxu0 0
    %639 = vmatprep.mubr.bf16.mxu0 0
    %640 = vmatmul.mubr.bf16.gmra.mrb[0].mxu0 %v437
    %v641 = vpop.f32.mrb[0].mxu0
    %v642 = vadd.f32 0.0, %v641
    %v643 = vpop.f32.mrb[0].mxu0
    %v644 = vpop.f32.mrb[0].mxu0
    %v645 = vpop.f32.mrb[0].mxu0
    %646 = vdwg.mxu0
    %v647 = vld [vmem:[#allocation6] sm:$0xf]
    %v648 = vld [vmem:[#allocation6 + $0x4] sm:$0xf]
    %v649 = vld [vmem:[#allocation6 + $0x8] sm:$0xf]
    %v650 = vld [vmem:[#allocation6 + $0xc] sm:$0xf]
    %v651 = vld [vmem:[#allocation6 + $0x10] sm:$0xf]
    %v652 = vld [vmem:[#allocation6 + $0x14] sm:$0xf]
    %v653 = vld [vmem:[#allocation6 + $0x18] sm:$0xf]
    %v654 = vld [vmem:[#allocation6 + $0x1c] sm:$0xf]
    %v655 = vld [vmem:[#allocation6 + $0x20] sm:$0xf]
    %v656 = vld [vmem:[#allocation6 + $0x24] sm:$0xf]
    %v657 = vld [vmem:[#allocation6 + $0x28] sm:$0xf]
    %v658 = vld [vmem:[#allocation6 + $0x2c] sm:$0xf]
    %v659 = vld [vmem:[#allocation6 + $0x30] sm:$0xf]
    %v660 = vld [vmem:[#allocation6 + $0x34] sm:$0xf]
    %v661 = vld [vmem:[#allocation6 + $0x38] sm:$0xf]
    %v662 = vld [vmem:[#allocation6 + $0x3c] sm:$0xf]
    %v679 = vunpack.c.l.b16 %v647
    %v680 = vunpack.c.l.b16 %v648
    %v681 = vunpack.c.l.b16 %v649
    %v682 = vunpack.c.l.b16 %v650
    %v683 = vunpack.c.l.b16 %v651
    %v684 = vunpack.c.l.b16 %v652
    %v685 = vunpack.c.l.b16 %v653
    %v686 = vunpack.c.l.b16 %v654
    %v687 = vunpack.c.l.b16 %v655
    %v688 = vunpack.c.l.b16 %v656
    %v689 = vunpack.c.l.b16 %v657
    %v690 = vunpack.c.l.b16 %v658
    %v691 = vunpack.c.l.b16 %v659
    %v692 = vunpack.c.l.b16 %v660
    %v693 = vunpack.c.l.b16 %v661
    %v694 = vunpack.c.l.b16 %v662
    %v695 = vpack.c.b16 %v680, %v679
    %v696 = vpack.c.b16 %v682, %v681
    %v697 = vpack.c.b16 %v684, %v683
    %v698 = vpack.c.b16 %v686, %v685
    %v699 = vpack.c.b16 %v688, %v687
    %v700 = vpack.c.b16 %v690, %v689
    %v701 = vpack.c.b16 %v692, %v691
    %v702 = vpack.c.b16 %v694, %v693
    %711 = vmatprep.subr.bf16.mxu0 0
    %712 = vmatpush1.bf16.msra.mxu0 %v695
    %713 = vmatprep.subr.bf16.mxu0 0
    %714 = vmatpush1.bf16.msra.mxu0 %v696
    %715 = vmatprep.subr.bf16.mxu0 0
    %716 = vmatpush1.bf16.msra.mxu0 %v697
    %717 = vmatprep.subr.bf16.mxu0 0
    %718 = vmatpush1.bf16.msra.mxu0 %v698
    %719 = vmatprep.subr.bf16.mxu0 0
    %720 = vmatpush1.bf16.msra.mxu0 %v699
    %721 = vmatprep.subr.bf16.mxu0 0
    %722 = vmatpush1.bf16.msra.mxu0 %v700
    %723 = vmatprep.subr.bf16.mxu0 0
    %724 = vmatpush1.bf16.msra.mxu0 %v701
    %725 = vmatprep.subr.bf16.mxu0 0
    %726 = vmatpush1.bf16.msra.mxu0 %v702
    %727 = vmatprep.subr.bf16.mxu0 0
    %728 = vmatpush1.bf16.msra.mxu0 0
    %729 = vmatprep.subr.bf16.mxu0 0
    %730 = vmatpush1.bf16.msra.mxu0 0
    %731 = vmatprep.subr.bf16.mxu0 0
    %732 = vmatpush1.bf16.msra.mxu0 0
    %733 = vmatprep.subr.bf16.mxu0 0
    %734 = vmatpush1.bf16.msra.mxu0 0
    %735 = vmatprep.subr.bf16.mxu0 0
    %736 = vmatpush1.bf16.msra.mxu0 0
    %737 = vmatprep.subr.bf16.mxu0 0
    %738 = vmatpush1.bf16.msra.mxu0 0
    %739 = vmatprep.subr.bf16.mxu0 0
    %740 = vmatpush1.bf16.msra.mxu0 0
    %741 = vmatprep.subr.bf16.mxu0 0
    %742 = vmatpush1.bf16.msra.mxu0 0
    %743 = vmatprep.mubr.bf16.mxu0 0
    %744 = vmatmul.mubr.bf16.gmra.mrb[0].mxu0 %v331
    %v745 = vpop.f32.mrb[0].mxu0
    %v746 = vadd.f32 0.0, %v745
    %v747 = vpop.f32.mrb[0].mxu0
    %v748 = vpop.f32.mrb[0].mxu0
    %v749 = vpop.f32.mrb[0].mxu0
    %750 = vdwg.mxu0
    %v751 = vadd.f32 %v306, %v746
    %v752 = vtanh.pop %v751
    %v753 = vpack.c.bf16 %v752, %v752
    %754 = vmatprep.subr.bf16.mxu0 0
    %755 = vmatpush1.bf16.msra.mxu0 %v380
    %756 = vmatprep.subr.bf16.mxu0 0
    %757 = vmatpush1.bf16.msra.mxu0 %v381
    %758 = vmatprep.subr.bf16.mxu0 0
    %759 = vmatpush1.bf16.msra.mxu0 %v382
    %760 = vmatprep.subr.bf16.mxu0 0
    %761 = vmatpush1.bf16.msra.mxu0 %v383
    %762 = vmatprep.subr.bf16.mxu0 0
    %763 = vmatpush1.bf16.msra.mxu0 %v384
    %764 = vmatprep.subr.bf16.mxu0 0
    %765 = vmatpush1.bf16.msra.mxu0 %v385
    %766 = vmatprep.subr.bf16.mxu0 0
    %767 = vmatpush1.bf16.msra.mxu0 %v386
    %768 = vmatprep.subr.bf16.mxu0 0
    %769 = vmatpush1.bf16.msra.mxu0 %v387
    %770 = vmatprep.subr.bf16.mxu0 0
    %771 = vmatpush1.bf16.msra.mxu0 0
    %772 = vmatprep.subr.bf16.mxu0 0
    %773 = vmatpush1.bf16.msra.mxu0 0
    %774 = vmatprep.subr.bf16.mxu0 0
    %775 = vmatpush1.bf16.msra.mxu0 0
    %776 = vmatprep.subr.bf16.mxu0 0
    %777 = vmatpush1.bf16.msra.mxu0 0
    %778 = vmatprep.subr.bf16.mxu0 0
    %779 = vmatpush1.bf16.msra.mxu0 0
    %780 = vmatprep.subr.bf16.mxu0 0
    %781 = vmatpush1.bf16.msra.mxu0 0
    %782 = vmatprep.subr.bf16.mxu0 0
    %783 = vmatpush1.bf16.msra.mxu0 0
    %784 = vmatprep.subr.bf16.mxu0 0
    %785 = vmatpush1.bf16.msra.mxu0 0
    %786 = vmatprep.mubr.bf16.mxu0 0
    %787 = vmatmul.mubr.bf16.gmra.mrb[0].mxu0 %v753
    %v788 = vpop.f32.mrb[0].mxu0
    %v789 = vadd.f32 %v642, %v788
    %v790 = vpop.f32.mrb[0].mxu0
    %v791 = vpop.f32.mrb[0].mxu0
    %v792 = vpop.f32.mrb[0].mxu0
    %793 = vdwg.mxu0
    %v794 = vadd.f32 %v789, %v115
    %v795 = vtanh.pop %v794
    %v796 = vpack.c.bf16 %v795, %v795
    %v797 = vld [vmem:[#allocation10 + $0x40] sm:$0xf]
    %v798 = vld [vmem:[#allocation10 + $0x44] sm:$0xf]
    %v799 = vld [vmem:[#allocation10 + $0x48] sm:$0xf]
    %v800 = vld [vmem:[#allocation10 + $0x4c] sm:$0xf]
    %v801 = vld [vmem:[#allocation10 + $0x50] sm:$0xf]
    %v802 = vld [vmem:[#allocation10 + $0x54] sm:$0xf]
    %v803 = vld [vmem:[#allocation10 + $0x58] sm:$0xf]
    %v804 = vld [vmem:[#allocation10 + $0x5c] sm:$0xf]
    %v805 = vld [vmem:[#allocation10 + $0x60] sm:$0xf]
    %v806 = vld [vmem:[#allocation10 + $0x64] sm:$0xf]
    %v807 = vld [vmem:[#allocation10 + $0x68] sm:$0xf]
    %v808 = vld [vmem:[#allocation10 + $0x6c] sm:$0xf]
    %v809 = vld [vmem:[#allocation10 + $0x70] sm:$0xf]
    %v810 = vld [vmem:[#allocation10 + $0x74] sm:$0xf]
    %v811 = vld [vmem:[#allocation10 + $0x78] sm:$0xf]
    %v812 = vld [vmem:[#allocation10 + $0x7c] sm:$0xf]
    %v829 = vunpack.c.l.b16 %v797
    %v830 = vunpack.c.l.b16 %v798
    %v831 = vunpack.c.l.b16 %v799
    %v832 = vunpack.c.l.b16 %v800
    %v833 = vunpack.c.l.b16 %v801
    %v834 = vunpack.c.l.b16 %v802
    %v835 = vunpack.c.l.b16 %v803
    %v836 = vunpack.c.l.b16 %v804
    %v837 = vunpack.c.l.b16 %v805
    %v838 = vunpack.c.l.b16 %v806
    %v839 = vunpack.c.l.b16 %v807
    %v840 = vunpack.c.l.b16 %v808
    %v841 = vunpack.c.l.b16 %v809
    %v842 = vunpack.c.l.b16 %v810
    %v843 = vunpack.c.l.b16 %v811
    %v844 = vunpack.c.l.b16 %v812
    %v845 = vpack.c.b16 %v830, %v829
    %v846 = vpack.c.b16 %v832, %v831
    %v847 = vpack.c.b16 %v834, %v833
    %v848 = vpack.c.b16 %v836, %v835
    %v849 = vpack.c.b16 %v838, %v837
    %v850 = vpack.c.b16 %v840, %v839
    %v851 = vpack.c.b16 %v842, %v841
    %v852 = vpack.c.b16 %v844, %v843
    %861 = vmatprep.subr.bf16.mxu0 0
    %862 = vmatpush1.bf16.msra.mxu0 %v845
    %863 = vmatprep.subr.bf16.mxu0 0
    %864 = vmatpush1.bf16.msra.mxu0 %v846
    %865 = vmatprep.subr.bf16.mxu0 0
    %866 = vmatpush1.bf16.msra.mxu0 %v847
    %867 = vmatprep.subr.bf16.mxu0 0
    %868 = vmatpush1.bf16.msra.mxu0 %v848
    %869 = vmatprep.subr.bf16.mxu0 0
    %870 = vmatpush1.bf16.msra.mxu0 %v849
    %871 = vmatprep.subr.bf16.mxu0 0
    %872 = vmatpush1.bf16.msra.mxu0 %v850
    %873 = vmatprep.subr.bf16.mxu0 0
    %874 = vmatpush1.bf16.msra.mxu0 %v851
    %875 = vmatprep.subr.bf16.mxu0 0
    %876 = vmatpush1.bf16.msra.mxu0 %v852
    %877 = vmatprep.subr.bf16.mxu0 0
    %878 = vmatpush1.bf16.msra.mxu0 0
    %879 = vmatprep.subr.bf16.mxu0 0
    %880 = vmatpush1.bf16.msra.mxu0 0
    %881 = vmatprep.subr.bf16.mxu0 0
    %882 = vmatpush1.bf16.msra.mxu0 0
    %883 = vmatprep.subr.bf16.mxu0 0
    %884 = vmatpush1.bf16.msra.mxu0 0
    %885 = vmatprep.subr.bf16.mxu0 0
    %886 = vmatpush1.bf16.msra.mxu0 0
    %887 = vmatprep.subr.bf16.mxu0 0
    %888 = vmatpush1.bf16.msra.mxu0 0
    %889 = vmatprep.subr.bf16.mxu0 0
    %890 = vmatpush1.bf16.msra.mxu0 0
    %891 = vmatprep.subr.bf16.mxu0 0
    %892 = vmatpush1.bf16.msra.mxu0 0
    %893 = vmatprep.mubr.bf16.mxu0 0
    %894 = vmatmul.mubr.bf16.gmra.mrb[0].mxu0 %v796
    %v895 = vpop.f32.mrb[0].mxu0
    %v896 = vadd.f32 0.0, %v895
    %v897 = vpop.f32.mrb[0].mxu0
    %v898 = vpop.f32.mrb[0].mxu0
    %v899 = vpop.f32.mrb[0].mxu0
    %900 = vdwg.mxu0
    %v901 = vadd.f32 %v542, %v896
    %902 = vmatprep.subr.bf16.mxu0 0
    %903 = vmatpush1.bf16.msra.mxu0 %v591
    %904 = vmatprep.subr.bf16.mxu0 0
    %905 = vmatpush1.bf16.msra.mxu0 %v592
    %906 = vmatprep.subr.bf16.mxu0 0
    %907 = vmatpush1.bf16.msra.mxu0 %v593
    %908 = vmatprep.subr.bf16.mxu0 0
    %909 = vmatpush1.bf16.msra.mxu0 %v594
    %910 = vmatprep.subr.bf16.mxu0 0
    %911 = vmatpush1.bf16.msra.mxu0 %v595
    %912 = vmatprep.subr.bf16.mxu0 0
    %913 = vmatpush1.bf16.msra.mxu0 %v596
    %914 = vmatprep.subr.bf16.mxu0 0
    %915 = vmatpush1.bf16.msra.mxu0 %v597
    %916 = vmatprep.subr.bf16.mxu0 0
    %917 = vmatpush1.bf16.msra.mxu0 %v598
    %918 = vmatprep.subr.bf16.mxu0 0
    %919 = vmatpush1.bf16.msra.mxu0 0
    %920 = vmatprep.subr.bf16.mxu0 0
    %921 = vmatpush1.bf16.msra.mxu0 0
    %922 = vmatprep.subr.bf16.mxu0 0
    %923 = vmatpush1.bf16.msra.mxu0 0
    %924 = vmatprep.subr.bf16.mxu0 0
    %925 = vmatpush1.bf16.msra.mxu0 0
    %926 = vmatprep.subr.bf16.mxu0 0
    %927 = vmatpush1.bf16.msra.mxu0 0
    %928 = vmatprep.subr.bf16.mxu0 0
    %929 = vmatpush1.bf16.msra.mxu0 0
    %930 = vmatprep.subr.bf16.mxu0 0
    %931 = vmatpush1.bf16.msra.mxu0 0
    %932 = vmatprep.subr.bf16.mxu0 0
    %933 = vmatpush1.bf16.msra.mxu0 0
    %934 = vmatprep.mubr.bf16.mxu0 0
    %935 = vmatmul.mubr.bf16.gmra.mrb[0].mxu0 %v796
    %v936 = vpop.f32.mrb[0].mxu0
    %v937 = vadd.f32 0.0, %v936
    %v938 = vpop.f32.mrb[0].mxu0
    %v939 = vpop.f32.mrb[0].mxu0
    %v940 = vpop.f32.mrb[0].mxu0
    %941 = vdwg.mxu0
    %942 = vmatprep.subr.bf16.mxu0 0
    %943 = vmatpush1.bf16.msra.mxu0 %v695
    %944 = vmatprep.subr.bf16.mxu0 0
    %945 = vmatpush1.bf16.msra.mxu0 %v696
    %946 = vmatprep.subr.bf16.mxu0 0
    %947 = vmatpush1.bf16.msra.mxu0 %v697
    %948 = vmatprep.subr.bf16.mxu0 0
    %949 = vmatpush1.bf16.msra.mxu0 %v698
    %950 = vmatprep.subr.bf16.mxu0 0
    %951 = vmatpush1.bf16.msra.mxu0 %v699
    %952 = vmatprep.subr.bf16.mxu0 0
    %953 = vmatpush1.bf16.msra.mxu0 %v700
    %954 = vmatprep.subr.bf16.mxu0 0
    %955 = vmatpush1.bf16.msra.mxu0 %v701
    %956 = vmatprep.subr.bf16.mxu0 0
    %957 = vmatpush1.bf16.msra.mxu0 %v702
    %958 = vmatprep.subr.bf16.mxu0 0
    %959 = vmatpush1.bf16.msra.mxu0 0
    %960 = vmatprep.subr.bf16.mxu0 0
    %961 = vmatpush1.bf16.msra.mxu0 0
    %962 = vmatprep.subr.bf16.mxu0 0
    %963 = vmatpush1.bf16.msra.mxu0 0
    %964 = vmatprep.subr.bf16.mxu0 0
    %965 = vmatpush1.bf16.msra.mxu0 0
    %966 = vmatprep.subr.bf16.mxu0 0
    %967 = vmatpush1.bf16.msra.mxu0 0
    %968 = vmatprep.subr.bf16.mxu0 0
    %969 = vmatpush1.bf16.msra.mxu0 0
    %970 = vmatprep.subr.bf16.mxu0 0
    %971 = vmatpush1.bf16.msra.mxu0 0
    %972 = vmatprep.subr.bf16.mxu0 0
    %973 = vmatpush1.bf16.msra.mxu0 0
    %974 = vmatprep.mubr.bf16.mxu0 0
    %975 = vmatmul.mubr.bf16.gmra.mrb[0].mxu0 %v753
    %v976 = vpop.f32.mrb[0].mxu0
    %v977 = vadd.f32 0.0, %v976
    %v978 = vpop.f32.mrb[0].mxu0
    %v979 = vpop.f32.mrb[0].mxu0
    %v980 = vpop.f32.mrb[0].mxu0
    %981 = vdwg.mxu0
    %v982 = vadd.f32 %v311, %v977
    %v983 = vtanh.pop %v982
    %v984 = vpack.c.bf16 %v983, %v983
    %985 = vmatprep.subr.bf16.mxu0 0
    %986 = vmatpush1.bf16.msra.mxu0 %v380
    %987 = vmatprep.subr.bf16.mxu0 0
    %988 = vmatpush1.bf16.msra.mxu0 %v381
    %989 = vmatprep.subr.bf16.mxu0 0
    %990 = vmatpush1.bf16.msra.mxu0 %v382
    %991 = vmatprep.subr.bf16.mxu0 0
    %992 = vmatpush1.bf16.msra.mxu0 %v383
    %993 = vmatprep.subr.bf16.mxu0 0
    %994 = vmatpush1.bf16.msra.mxu0 %v384
    %995 = vmatprep.subr.bf16.mxu0 0
    %996 = vmatpush1.bf16.msra.mxu0 %v385
    %997 = vmatprep.subr.bf16.mxu0 0
    %998 = vmatpush1.bf16.msra.mxu0 %v386
    %999 = vmatprep.subr.bf16.mxu0 0
    %1000 = vmatpush1.bf16.msra.mxu0 %v387
    %1001 = vmatprep.subr.bf16.mxu0 0
    %1002 = vmatpush1.bf16.msra.mxu0 0
    %1003 = vmatprep.subr.bf16.mxu0 0
    %1004 = vmatpush1.bf16.msra.mxu0 0
    %1005 = vmatprep.subr.bf16.mxu0 0
    %1006 = vmatpush1.bf16.msra.mxu0 0
    %1007 = vmatprep.subr.bf16.mxu0 0
    %1008 = vmatpush1.bf16.msra.mxu0 0
    %1009 = vmatprep.subr.bf16.mxu0 0
    %1010 = vmatpush1.bf16.msra.mxu0 0
    %1011 = vmatprep.subr.bf16.mxu0 0
    %1012 = vmatpush1.bf16.msra.mxu0 0
    %1013 = vmatprep.subr.bf16.mxu0 0
    %1014 = vmatpush1.bf16.msra.mxu0 0
    %1015 = vmatprep.subr.bf16.mxu0 0
    %1016 = vmatpush1.bf16.msra.mxu0 0
    %1017 = vmatprep.mubr.bf16.mxu0 0
    %1018 = vmatmul.mubr.bf16.gmra.mrb[0].mxu0 %v984
    %v1019 = vpop.f32.mrb[0].mxu0
    %v1020 = vadd.f32 %v937, %v1019
    %v1021 = vpop.f32.mrb[0].mxu0
    %v1022 = vpop.f32.mrb[0].mxu0
    %v1023 = vpop.f32.mrb[0].mxu0
    %1024 = vdwg.mxu0
    %v1025 = vadd.f32 %v1020, %v115
    %v1026 = vtanh.pop %v1025
    %v1027 = vpack.c.bf16 %v1026, %v1026
    %v1028 = vld [vmem:[#allocation10 + $0x80] sm:$0xf]
    %v1029 = vld [vmem:[#allocation10 + $0x84] sm:$0xf]
    %v1030 = vld [vmem:[#allocation10 + $0x88] sm:$0xf]
    %v1031 = vld [vmem:[#allocation10 + $0x8c] sm:$0xf]
    %v1032 = vld [vmem:[#allocation10 + $0x90] sm:$0xf]
    %v1033 = vld [vmem:[#allocation10 + $0x94] sm:$0xf]
    %v1034 = vld [vmem:[#allocation10 + $0x98] sm:$0xf]
    %v1035 = vld [vmem:[#allocation10 + $0x9c] sm:$0xf]
    %v1036 = vld [vmem:[#allocation10 + $0xa0] sm:$0xf]
    %v1037 = vld [vmem:[#allocation10 + $0xa4] sm:$0xf]
    %v1038 = vld [vmem:[#allocation10 + $0xa8] sm:$0xf]
    %v1039 = vld [vmem:[#allocation10 + $0xac] sm:$0xf]
    %v1040 = vld [vmem:[#allocation10 + $0xb0] sm:$0xf]
    %v1041 = vld [vmem:[#allocation10 + $0xb4] sm:$0xf]
    %v1042 = vld [vmem:[#allocation10 + $0xb8] sm:$0xf]
    %v1043 = vld [vmem:[#allocation10 + $0xbc] sm:$0xf]
    %v1060 = vunpack.c.l.b16 %v1028
    %v1061 = vunpack.c.l.b16 %v1029
    %v1062 = vunpack.c.l.b16 %v1030
    %v1063 = vunpack.c.l.b16 %v1031
    %v1064 = vunpack.c.l.b16 %v1032
    %v1065 = vunpack.c.l.b16 %v1033
    %v1066 = vunpack.c.l.b16 %v1034
    %v1067 = vunpack.c.l.b16 %v1035
    %v1068 = vunpack.c.l.b16 %v1036
    %v1069 = vunpack.c.l.b16 %v1037
    %v1070 = vunpack.c.l.b16 %v1038
    %v1071 = vunpack.c.l.b16 %v1039
    %v1072 = vunpack.c.l.b16 %v1040
    %v1073 = vunpack.c.l.b16 %v1041
    %v1074 = vunpack.c.l.b16 %v1042
    %v1075 = vunpack.c.l.b16 %v1043
    %v1076 = vpack.c.b16 %v1061, %v1060
    %v1077 = vpack.c.b16 %v1063, %v1062
    %v1078 = vpack.c.b16 %v1065, %v1064
    %v1079 = vpack.c.b16 %v1067, %v1066
    %v1080 = vpack.c.b16 %v1069, %v1068
    %v1081 = vpack.c.b16 %v1071, %v1070
    %v1082 = vpack.c.b16 %v1073, %v1072
    %v1083 = vpack.c.b16 %v1075, %v1074
    %1092 = vmatprep.subr.bf16.mxu0 0
    %1093 = vmatpush1.bf16.msra.mxu0 %v1076
    %1094 = vmatprep.subr.bf16.mxu0 0
    %1095 = vmatpush1.bf16.msra.mxu0 %v1077
    %1096 = vmatprep.subr.bf16.mxu0 0
    %1097 = vmatpush1.bf16.msra.mxu0 %v1078
    %1098 = vmatprep.subr.bf16.mxu0 0
    %1099 = vmatpush1.bf16.msra.mxu0 %v1079
    %1100 = vmatprep.subr.bf16.mxu0 0
    %1101 = vmatpush1.bf16.msra.mxu0 %v1080
    %1102 = vmatprep.subr.bf16.mxu0 0
    %1103 = vmatpush1.bf16.msra.mxu0 %v1081
    %1104 = vmatprep.subr.bf16.mxu0 0
    %1105 = vmatpush1.bf16.msra.mxu0 %v1082
    %1106 = vmatprep.subr.bf16.mxu0 0
    %1107 = vmatpush1.bf16.msra.mxu0 %v1083
    %1108 = vmatprep.subr.bf16.mxu0 0
    %1109 = vmatpush1.bf16.msra.mxu0 0
    %1110 = vmatprep.subr.bf16.mxu0 0
    %1111 = vmatpush1.bf16.msra.mxu0 0
    %1112 = vmatprep.subr.bf16.mxu0 0
    %1113 = vmatpush1.bf16.msra.mxu0 0
    %1114 = vmatprep.subr.bf16.mxu0 0
    %1115 = vmatpush1.bf16.msra.mxu0 0
    %1116 = vmatprep.subr.bf16.mxu0 0
    %1117 = vmatpush1.bf16.msra.mxu0 0
    %1118 = vmatprep.subr.bf16.mxu0 0
    %1119 = vmatpush1.bf16.msra.mxu0 0
    %1120 = vmatprep.subr.bf16.mxu0 0
    %1121 = vmatpush1.bf16.msra.mxu0 0
    %1122 = vmatprep.subr.bf16.mxu0 0
    %1123 = vmatpush1.bf16.msra.mxu0 0
    %1124 = vmatprep.mubr.bf16.mxu0 0
    %1125 = vmatmul.mubr.bf16.gmra.mrb[0].mxu0 %v1027
    %v1126 = vpop.f32.mrb[0].mxu0
    %v1127 = vadd.f32 0.0, %v1126
    %v1128 = vpop.f32.mrb[0].mxu0
    %v1129 = vpop.f32.mrb[0].mxu0
    %v1130 = vpop.f32.mrb[0].mxu0
    %1131 = vdwg.mxu0
    %v1132 = vadd.f32 %v901, %v1127
    %1133 = vmatprep.subr.bf16.mxu0 0
    %1134 = vmatpush1.bf16.msra.mxu0 %v591
    %1135 = vmatprep.subr.bf16.mxu0 0
    %1136 = vmatpush1.bf16.msra.mxu0 %v592
    %1137 = vmatprep.subr.bf16.mxu0 0
    %1138 = vmatpush1.bf16.msra.mxu0 %v593
    %1139 = vmatprep.subr.bf16.mxu0 0
    %1140 = vmatpush1.bf16.msra.mxu0 %v594
    %1141 = vmatprep.subr.bf16.mxu0 0
    %1142 = vmatpush1.bf16.msra.mxu0 %v595
    %1143 = vmatprep.subr.bf16.mxu0 0
    %1144 = vmatpush1.bf16.msra.mxu0 %v596
    %1145 = vmatprep.subr.bf16.mxu0 0
    %1146 = vmatpush1.bf16.msra.mxu0 %v597
    %1147 = vmatprep.subr.bf16.mxu0 0
    %1148 = vmatpush1.bf16.msra.mxu0 %v598
    %1149 = vmatprep.subr.bf16.mxu0 0
    %1150 = vmatpush1.bf16.msra.mxu0 0
    %1151 = vmatprep.subr.bf16.mxu0 0
    %1152 = vmatpush1.bf16.msra.mxu0 0
    %1153 = vmatprep.subr.bf16.mxu0 0
    %1154 = vmatpush1.bf16.msra.mxu0 0
    %1155 = vmatprep.subr.bf16.mxu0 0
    %1156 = vmatpush1.bf16.msra.mxu0 0
    %1157 = vmatprep.subr.bf16.mxu0 0
    %1158 = vmatpush1.bf16.msra.mxu0 0
    %1159 = vmatprep.subr.bf16.mxu0 0
    %1160 = vmatpush1.bf16.msra.mxu0 0
    %1161 = vmatprep.subr.bf16.mxu0 0
    %1162 = vmatpush1.bf16.msra.mxu0 0
    %1163 = vmatprep.subr.bf16.mxu0 0
    %1164 = vmatpush1.bf16.msra.mxu0 0
    %1165 = vmatprep.mubr.bf16.mxu0 0
    %1166 = vmatmul.mubr.bf16.gmra.mrb[0].mxu0 %v1027
    %v1167 = vpop.f32.mrb[0].mxu0
    %v1168 = vadd.f32 0.0, %v1167
    %v1169 = vpop.f32.mrb[0].mxu0
    %v1170 = vpop.f32.mrb[0].mxu0
    %v1171 = vpop.f32.mrb[0].mxu0
    %1172 = vdwg.mxu0
    %1173 = vmatprep.subr.bf16.mxu0 0
    %1174 = vmatpush1.bf16.msra.mxu0 %v695
    %1175 = vmatprep.subr.bf16.mxu0 0
    %1176 = vmatpush1.bf16.msra.mxu0 %v696
    %1177 = vmatprep.subr.bf16.mxu0 0
    %1178 = vmatpush1.bf16.msra.mxu0 %v697
    %1179 = vmatprep.subr.bf16.mxu0 0
    %1180 = vmatpush1.bf16.msra.mxu0 %v698
    %1181 = vmatprep.subr.bf16.mxu0 0
    %1182 = vmatpush1.bf16.msra.mxu0 %v699
    %1183 = vmatprep.subr.bf16.mxu0 0
    %1184 = vmatpush1.bf16.msra.mxu0 %v700
    %1185 = vmatprep.subr.bf16.mxu0 0
    %1186 = vmatpush1.bf16.msra.mxu0 %v701
    %1187 = vmatprep.subr.bf16.mxu0 0
    %1188 = vmatpush1.bf16.msra.mxu0 %v702
    %1189 = vmatprep.subr.bf16.mxu0 0
    %1190 = vmatpush1.bf16.msra.mxu0 0
    %1191 = vmatprep.subr.bf16.mxu0 0
    %1192 = vmatpush1.bf16.msra.mxu0 0
    %1193 = vmatprep.subr.bf16.mxu0 0
    %1194 = vmatpush1.bf16.msra.mxu0 0
    %1195 = vmatprep.subr.bf16.mxu0 0
    %1196 = vmatpush1.bf16.msra.mxu0 0
    %1197 = vmatprep.subr.bf16.mxu0 0
    %1198 = vmatpush1.bf16.msra.mxu0 0
    %1199 = vmatprep.subr.bf16.mxu0 0
    %1200 = vmatpush1.bf16.msra.mxu0 0
    %1201 = vmatprep.subr.bf16.mxu0 0
    %1202 = vmatpush1.bf16.msra.mxu0 0
    %1203 = vmatprep.subr.bf16.mxu0 0
    %1204 = vmatpush1.bf16.msra.mxu0 0
    %1205 = vmatprep.mubr.bf16.mxu0 0
    %1206 = vmatmul.mubr.bf16.gmra.mrb[0].mxu0 %v984
    %v1207 = vpop.f32.mrb[0].mxu0
    %v1208 = vadd.f32 0.0, %v1207
    %v1209 = vpop.f32.mrb[0].mxu0
    %v1210 = vpop.f32.mrb[0].mxu0
    %v1211 = vpop.f32.mrb[0].mxu0
    %1212 = vdwg.mxu0
    %v1213 = vadd.f32 %v314, %v1208
    %v1214 = vtanh.pop %v1213
    %v1215 = vpack.c.bf16 %v1214, %v1214
    %1216 = vmatprep.subr.bf16.mxu0 0
    %1217 = vmatpush1.bf16.msra.mxu0 %v380
    %1218 = vmatprep.subr.bf16.mxu0 0
    %1219 = vmatpush1.bf16.msra.mxu0 %v381
    %1220 = vmatprep.subr.bf16.mxu0 0
    %1221 = vmatpush1.bf16.msra.mxu0 %v382
    %1222 = vmatprep.subr.bf16.mxu0 0
    %1223 = vmatpush1.bf16.msra.mxu0 %v383
    %1224 = vmatprep.subr.bf16.mxu0 0
    %1225 = vmatpush1.bf16.msra.mxu0 %v384
    %1226 = vmatprep.subr.bf16.mxu0 0
    %1227 = vmatpush1.bf16.msra.mxu0 %v385
    %1228 = vmatprep.subr.bf16.mxu0 0
    %1229 = vmatpush1.bf16.msra.mxu0 %v386
    %1230 = vmatprep.subr.bf16.mxu0 0
    %1231 = vmatpush1.bf16.msra.mxu0 %v387
    %1232 = vmatprep.subr.bf16.mxu0 0
    %1233 = vmatpush1.bf16.msra.mxu0 0
    %1234 = vmatprep.subr.bf16.mxu0 0
    %1235 = vmatpush1.bf16.msra.mxu0 0
    %1236 = vmatprep.subr.bf16.mxu0 0
    %1237 = vmatpush1.bf16.msra.mxu0 0
    %1238 = vmatprep.subr.bf16.mxu0 0
    %1239 = vmatpush1.bf16.msra.mxu0 0
    %1240 = vmatprep.subr.bf16.mxu0 0
    %1241 = vmatpush1.bf16.msra.mxu0 0
    %1242 = vmatprep.subr.bf16.mxu0 0
    %1243 = vmatpush1.bf16.msra.mxu0 0
    %1244 = vmatprep.subr.bf16.mxu0 0
    %1245 = vmatpush1.bf16.msra.mxu0 0
    %1246 = vmatprep.subr.bf16.mxu0 0
    %1247 = vmatpush1.bf16.msra.mxu0 0
    %1248 = vmatprep.mubr.bf16.mxu0 0
    %1249 = vmatmul.mubr.bf16.gmra.mrb[0].mxu0 %v1215
    %v1250 = vpop.f32.mrb[0].mxu0
    %v1251 = vadd.f32 %v1168, %v1250
    %v1252 = vpop.f32.mrb[0].mxu0
    %v1253 = vpop.f32.mrb[0].mxu0
    %v1254 = vpop.f32.mrb[0].mxu0
    %1255 = vdwg.mxu0
    %v1256 = vadd.f32 %v1251, %v115
    %v1257 = vtanh.pop %v1256
    %v1258 = vpack.c.bf16 %v1257, %v1257
    %v1259 = vld [vmem:[#allocation10 + $0xc0] sm:$0xf]
    %v1260 = vld [vmem:[#allocation10 + $0xc4] sm:$0xf]
    %v1261 = vld [vmem:[#allocation10 + $0xc8] sm:$0xf]
    %v1262 = vld [vmem:[#allocation10 + $0xcc] sm:$0xf]
    %v1263 = vld [vmem:[#allocation10 + $0xd0] sm:$0xf]
    %v1264 = vld [vmem:[#allocation10 + $0xd4] sm:$0xf]
    %v1265 = vld [vmem:[#allocation10 + $0xd8] sm:$0xf]
    %v1266 = vld [vmem:[#allocation10 + $0xdc] sm:$0xf]
    %v1267 = vld [vmem:[#allocation10 + $0xe0] sm:$0xf]
    %v1268 = vld [vmem:[#allocation10 + $0xe4] sm:$0xf]
    %v1269 = vld [vmem:[#allocation10 + $0xe8] sm:$0xf]
    %v1270 = vld [vmem:[#allocation10 + $0xec] sm:$0xf]
    %v1271 = vld [vmem:[#allocation10 + $0xf0] sm:$0xf]
    %v1272 = vld [vmem:[#allocation10 + $0xf4] sm:$0xf]
    %v1273 = vld [vmem:[#allocation10 + $0xf8] sm:$0xf]
    %v1274 = vld [vmem:[#allocation10 + $0xfc] sm:$0xf]
    %v1291 = vunpack.c.l.b16 %v1259
    %v1292 = vunpack.c.l.b16 %v1260
    %v1293 = vunpack.c.l.b16 %v1261
    %v1294 = vunpack.c.l.b16 %v1262
    %v1295 = vunpack.c.l.b16 %v1263
    %v1296 = vunpack.c.l.b16 %v1264
    %v1297 = vunpack.c.l.b16 %v1265
    %v1298 = vunpack.c.l.b16 %v1266
    %v1299 = vunpack.c.l.b16 %v1267
    %v1300 = vunpack.c.l.b16 %v1268
    %v1301 = vunpack.c.l.b16 %v1269
    %v1302 = vunpack.c.l.b16 %v1270
    %v1303 = vunpack.c.l.b16 %v1271
    %v1304 = vunpack.c.l.b16 %v1272
    %v1305 = vunpack.c.l.b16 %v1273
    %v1306 = vunpack.c.l.b16 %v1274
    %v1307 = vpack.c.b16 %v1292, %v1291
    %v1308 = vpack.c.b16 %v1294, %v1293
    %v1309 = vpack.c.b16 %v1296, %v1295
    %v1310 = vpack.c.b16 %v1298, %v1297
    %v1311 = vpack.c.b16 %v1300, %v1299
    %v1312 = vpack.c.b16 %v1302, %v1301
    %v1313 = vpack.c.b16 %v1304, %v1303
    %v1314 = vpack.c.b16 %v1306, %v1305
    %1323 = vmatprep.subr.bf16.mxu0 0
    %1324 = vmatpush1.bf16.msra.mxu0 %v1307
    %1325 = vmatprep.subr.bf16.mxu0 0
    %1326 = vmatpush1.bf16.msra.mxu0 %v1308
    %1327 = vmatprep.subr.bf16.mxu0 0
    %1328 = vmatpush1.bf16.msra.mxu0 %v1309
    %1329 = vmatprep.subr.bf16.mxu0 0
    %1330 = vmatpush1.bf16.msra.mxu0 %v1310
    %1331 = vmatprep.subr.bf16.mxu0 0
    %1332 = vmatpush1.bf16.msra.mxu0 %v1311
    %1333 = vmatprep.subr.bf16.mxu0 0
    %1334 = vmatpush1.bf16.msra.mxu0 %v1312
    %1335 = vmatprep.subr.bf16.mxu0 0
    %1336 = vmatpush1.bf16.msra.mxu0 %v1313
    %1337 = vmatprep.subr.bf16.mxu0 0
    %1338 = vmatpush1.bf16.msra.mxu0 %v1314
    %1339 = vmatprep.subr.bf16.mxu0 0
    %1340 = vmatpush1.bf16.msra.mxu0 0
    %1341 = vmatprep.subr.bf16.mxu0 0
    %1342 = vmatpush1.bf16.msra.mxu0 0
    %1343 = vmatprep.subr.bf16.mxu0 0
    %1344 = vmatpush1.bf16.msra.mxu0 0
    %1345 = vmatprep.subr.bf16.mxu0 0
    %1346 = vmatpush1.bf16.msra.mxu0 0
    %1347 = vmatprep.subr.bf16.mxu0 0
    %1348 = vmatpush1.bf16.msra.mxu0 0
    %1349 = vmatprep.subr.bf16.mxu0 0
    %1350 = vmatpush1.bf16.msra.mxu0 0
    %1351 = vmatprep.subr.bf16.mxu0 0
    %1352 = vmatpush1.bf16.msra.mxu0 0
    %1353 = vmatprep.subr.bf16.mxu0 0
    %1354 = vmatpush1.bf16.msra.mxu0 0
    %1355 = vmatprep.mubr.bf16.mxu0 0
    %1356 = vmatmul.mubr.bf16.gmra.mrb[0].mxu0 %v1258
    %v1357 = vpop.f32.mrb[0].mxu0
    %v1358 = vadd.f32 0.0, %v1357
    %v1359 = vpop.f32.mrb[0].mxu0
    %v1360 = vpop.f32.mrb[0].mxu0
    %v1361 = vpop.f32.mrb[0].mxu0
    %1362 = vdwg.mxu0
    %v1363 = vadd.f32 %v1132, %v1358
    %1364 = vmatprep.subr.bf16.mxu0 0
    %1365 = vmatpush1.bf16.msra.mxu0 %v591
    %1366 = vmatprep.subr.bf16.mxu0 0
    %1367 = vmatpush1.bf16.msra.mxu0 %v592
    %1368 = vmatprep.subr.bf16.mxu0 0
    %1369 = vmatpush1.bf16.msra.mxu0 %v593
    %1370 = vmatprep.subr.bf16.mxu0 0
    %1371 = vmatpush1.bf16.msra.mxu0 %v594
    %1372 = vmatprep.subr.bf16.mxu0 0
    %1373 = vmatpush1.bf16.msra.mxu0 %v595
    %1374 = vmatprep.subr.bf16.mxu0 0
    %1375 = vmatpush1.bf16.msra.mxu0 %v596
    %1376 = vmatprep.subr.bf16.mxu0 0
    %1377 = vmatpush1.bf16.msra.mxu0 %v597
    %1378 = vmatprep.subr.bf16.mxu0 0
    %1379 = vmatpush1.bf16.msra.mxu0 %v598
    %1380 = vmatprep.subr.bf16.mxu0 0
    %1381 = vmatpush1.bf16.msra.mxu0 0
    %1382 = vmatprep.subr.bf16.mxu0 0
    %1383 = vmatpush1.bf16.msra.mxu0 0
    %1384 = vmatprep.subr.bf16.mxu0 0
    %1385 = vmatpush1.bf16.msra.mxu0 0
    %1386 = vmatprep.subr.bf16.mxu0 0
    %1387 = vmatpush1.bf16.msra.mxu0 0
    %1388 = vmatprep.subr.bf16.mxu0 0
    %1389 = vmatpush1.bf16.msra.mxu0 0
    %1390 = vmatprep.subr.bf16.mxu0 0
    %1391 = vmatpush1.bf16.msra.mxu0 0
    %1392 = vmatprep.subr.bf16.mxu0 0
    %1393 = vmatpush1.bf16.msra.mxu0 0
    %1394 = vmatprep.subr.bf16.mxu0 0
    %1395 = vmatpush1.bf16.msra.mxu0 0
    %1396 = vmatprep.mubr.bf16.mxu0 0
    %1397 = vmatmul.mubr.bf16.gmra.mrb[0].mxu0 %v1258
    %v1398 = vpop.f32.mrb[0].mxu0
    %v1399 = vadd.f32 0.0, %v1398
    %v1400 = vpop.f32.mrb[0].mxu0
    %v1401 = vpop.f32.mrb[0].mxu0
    %v1402 = vpop.f32.mrb[0].mxu0
    %1403 = vdwg.mxu0
    %1404 = vmatprep.subr.bf16.mxu0 0
    %1405 = vmatpush1.bf16.msra.mxu0 %v695
    %1406 = vmatprep.subr.bf16.mxu0 0
    %1407 = vmatpush1.bf16.msra.mxu0 %v696
    %1408 = vmatprep.subr.bf16.mxu0 0
    %1409 = vmatpush1.bf16.msra.mxu0 %v697
    %1410 = vmatprep.subr.bf16.mxu0 0
    %1411 = vmatpush1.bf16.msra.mxu0 %v698
    %1412 = vmatprep.subr.bf16.mxu0 0
    %1413 = vmatpush1.bf16.msra.mxu0 %v699
    %1414 = vmatprep.subr.bf16.mxu0 0
    %1415 = vmatpush1.bf16.msra.mxu0 %v700
    %1416 = vmatprep.subr.bf16.mxu0 0
    %1417 = vmatpush1.bf16.msra.mxu0 %v701
    %1418 = vmatprep.subr.bf16.mxu0 0
    %1419 = vmatpush1.bf16.msra.mxu0 %v702
    %1420 = vmatprep.subr.bf16.mxu0 0
    %1421 = vmatpush1.bf16.msra.mxu0 0
    %1422 = vmatprep.subr.bf16.mxu0 0
    %1423 = vmatpush1.bf16.msra.mxu0 0
    %1424 = vmatprep.subr.bf16.mxu0 0
    %1425 = vmatpush1.bf16.msra.mxu0 0
    %1426 = vmatprep.subr.bf16.mxu0 0
    %1427 = vmatpush1.bf16.msra.mxu0 0
    %1428 = vmatprep.subr.bf16.mxu0 0
    %1429 = vmatpush1.bf16.msra.mxu0 0
    %1430 = vmatprep.subr.bf16.mxu0 0
    %1431 = vmatpush1.bf16.msra.mxu0 0
    %1432 = vmatprep.subr.bf16.mxu0 0
    %1433 = vmatpush1.bf16.msra.mxu0 0
    %1434 = vmatprep.subr.bf16.mxu0 0
    %1435 = vmatpush1.bf16.msra.mxu0 0
    %1436 = vmatprep.mubr.bf16.mxu0 0
    %1437 = vmatmul.mubr.bf16.gmra.mrb[0].mxu0 %v1215
    %v1438 = vpop.f32.mrb[0].mxu0
    %v1439 = vadd.f32 0.0, %v1438
    %v1440 = vpop.f32.mrb[0].mxu0
    %v1441 = vpop.f32.mrb[0].mxu0
    %v1442 = vpop.f32.mrb[0].mxu0
    %1443 = vdwg.mxu0
    %v1444 = vadd.f32 %v319, %v1439
    %v1445 = vtanh.pop %v1444
    %v1446 = vpack.c.bf16 %v1445, %v1445
    %1447 = vmatprep.subr.bf16.mxu0 0
    %1448 = vmatpush1.bf16.msra.mxu0 %v380
    %1449 = vmatprep.subr.bf16.mxu0 0
    %1450 = vmatpush1.bf16.msra.mxu0 %v381
    %1451 = vmatprep.subr.bf16.mxu0 0
    %1452 = vmatpush1.bf16.msra.mxu0 %v382
    %1453 = vmatprep.subr.bf16.mxu0 0
    %1454 = vmatpush1.bf16.msra.mxu0 %v383
    %1455 = vmatprep.subr.bf16.mxu0 0
    %1456 = vmatpush1.bf16.msra.mxu0 %v384
    %1457 = vmatprep.subr.bf16.mxu0 0
    %1458 = vmatpush1.bf16.msra.mxu0 %v385
    %1459 = vmatprep.subr.bf16.mxu0 0
    %1460 = vmatpush1.bf16.msra.mxu0 %v386
    %1461 = vmatprep.subr.bf16.mxu0 0
    %1462 = vmatpush1.bf16.msra.mxu0 %v387
    %1463 = vmatprep.subr.bf16.mxu0 0
    %1464 = vmatpush1.bf16.msra.mxu0 0
    %1465 = vmatprep.subr.bf16.mxu0 0
    %1466 = vmatpush1.bf16.msra.mxu0 0
    %1467 = vmatprep.subr.bf16.mxu0 0
    %1468 = vmatpush1.bf16.msra.mxu0 0
    %1469 = vmatprep.subr.bf16.mxu0 0
    %1470 = vmatpush1.bf16.msra.mxu0 0
    %1471 = vmatprep.subr.bf16.mxu0 0
    %1472 = vmatpush1.bf16.msra.mxu0 0
    %1473 = vmatprep.subr.bf16.mxu0 0
    %1474 = vmatpush1.bf16.msra.mxu0 0
    %1475 = vmatprep.subr.bf16.mxu0 0
    %1476 = vmatpush1.bf16.msra.mxu0 0
    %1477 = vmatprep.subr.bf16.mxu0 0
    %1478 = vmatpush1.bf16.msra.mxu0 0
    %1479 = vmatprep.mubr.bf16.mxu0 0
    %1480 = vmatmul.mubr.bf16.gmra.mrb[0].mxu0 %v1446
    %v1481 = vpop.f32.mrb[0].mxu0
    %v1482 = vadd.f32 %v1399, %v1481
    %v1483 = vpop.f32.mrb[0].mxu0
    %v1484 = vpop.f32.mrb[0].mxu0
    %v1485 = vpop.f32.mrb[0].mxu0
    %1486 = vdwg.mxu0
    %v1487 = vadd.f32 %v1482, %v115
    %v1488 = vtanh.pop %v1487
    %v1489 = vpack.c.bf16 %v1488, %v1488
    %v1490 = vld [vmem:[#allocation10 + $0x100] sm:$0xf]
    %v1491 = vld [vmem:[#allocation10 + $0x104] sm:$0xf]
    %v1492 = vld [vmem:[#allocation10 + $0x108] sm:$0xf]
    %v1493 = vld [vmem:[#allocation10 + $0x10c] sm:$0xf]
    %v1494 = vld [vmem:[#allocation10 + $0x110] sm:$0xf]
    %v1495 = vld [vmem:[#allocation10 + $0x114] sm:$0xf]
    %v1496 = vld [vmem:[#allocation10 + $0x118] sm:$0xf]
    %v1497 = vld [vmem:[#allocation10 + $0x11c] sm:$0xf]
    %v1498 = vld [vmem:[#allocation10 + $0x120] sm:$0xf]
    %v1499 = vld [vmem:[#allocation10 + $0x124] sm:$0xf]
    %v1500 = vld [vmem:[#allocation10 + $0x128] sm:$0xf]
    %v1501 = vld [vmem:[#allocation10 + $0x12c] sm:$0xf]
    %v1502 = vld [vmem:[#allocation10 + $0x130] sm:$0xf]
    %v1503 = vld [vmem:[#allocation10 + $0x134] sm:$0xf]
    %v1504 = vld [vmem:[#allocation10 + $0x138] sm:$0xf]
    %v1505 = vld [vmem:[#allocation10 + $0x13c] sm:$0xf]
    %v1522 = vunpack.c.l.b16 %v1490
    %v1523 = vunpack.c.l.b16 %v1491
    %v1524 = vunpack.c.l.b16 %v1492
    %v1525 = vunpack.c.l.b16 %v1493
    %v1526 = vunpack.c.l.b16 %v1494
    %v1527 = vunpack.c.l.b16 %v1495
    %v1528 = vunpack.c.l.b16 %v1496
    %v1529 = vunpack.c.l.b16 %v1497
    %v1530 = vunpack.c.l.b16 %v1498
    %v1531 = vunpack.c.l.b16 %v1499
    %v1532 = vunpack.c.l.b16 %v1500
    %v1533 = vunpack.c.l.b16 %v1501
    %v1534 = vunpack.c.l.b16 %v1502
    %v1535 = vunpack.c.l.b16 %v1503
    %v1536 = vunpack.c.l.b16 %v1504
    %v1537 = vunpack.c.l.b16 %v1505
    %v1538 = vpack.c.b16 %v1523, %v1522
    %v1539 = vpack.c.b16 %v1525, %v1524
    %v1540 = vpack.c.b16 %v1527, %v1526
    %v1541 = vpack.c.b16 %v1529, %v1528
    %v1542 = vpack.c.b16 %v1531, %v1530
    %v1543 = vpack.c.b16 %v1533, %v1532
    %v1544 = vpack.c.b16 %v1535, %v1534
    %v1545 = vpack.c.b16 %v1537, %v1536
    %1554 = vmatprep.subr.bf16.mxu0 0
    %1555 = vmatpush1.bf16.msra.mxu0 %v1538
    %1556 = vmatprep.subr.bf16.mxu0 0
    %1557 = vmatpush1.bf16.msra.mxu0 %v1539
    %1558 = vmatprep.subr.bf16.mxu0 0
    %1559 = vmatpush1.bf16.msra.mxu0 %v1540
    %1560 = vmatprep.subr.bf16.mxu0 0
    %1561 = vmatpush1.bf16.msra.mxu0 %v1541
    %1562 = vmatprep.subr.bf16.mxu0 0
    %1563 = vmatpush1.bf16.msra.mxu0 %v1542
    %1564 = vmatprep.subr.bf16.mxu0 0
    %1565 = vmatpush1.bf16.msra.mxu0 %v1543
    %1566 = vmatprep.subr.bf16.mxu0 0
    %1567 = vmatpush1.bf16.msra.mxu0 %v1544
    %1568 = vmatprep.subr.bf16.mxu0 0
    %1569 = vmatpush1.bf16.msra.mxu0 %v1545
    %1570 = vmatprep.subr.bf16.mxu0 0
    %1571 = vmatpush1.bf16.msra.mxu0 0
    %1572 = vmatprep.subr.bf16.mxu0 0
    %1573 = vmatpush1.bf16.msra.mxu0 0
    %1574 = vmatprep.subr.bf16.mxu0 0
    %1575 = vmatpush1.bf16.msra.mxu0 0
    %1576 = vmatprep.subr.bf16.mxu0 0
    %1577 = vmatpush1.bf16.msra.mxu0 0
    %1578 = vmatprep.subr.bf16.mxu0 0
    %1579 = vmatpush1.bf16.msra.mxu0 0
    %1580 = vmatprep.subr.bf16.mxu0 0
    %1581 = vmatpush1.bf16.msra.mxu0 0
    %1582 = vmatprep.subr.bf16.mxu0 0
    %1583 = vmatpush1.bf16.msra.mxu0 0
    %1584 = vmatprep.subr.bf16.mxu0 0
    %1585 = vmatpush1.bf16.msra.mxu0 0
    %1586 = vmatprep.mubr.bf16.mxu0 0
    %1587 = vmatmul.mubr.bf16.gmra.mrb[0].mxu0 %v1489
    %v1588 = vpop.f32.mrb[0].mxu0
    %v1589 = vadd.f32 0.0, %v1588
    %v1590 = vpop.f32.mrb[0].mxu0
    %v1591 = vpop.f32.mrb[0].mxu0
    %v1592 = vpop.f32.mrb[0].mxu0
    %1593 = vdwg.mxu0
    %v1594 = vadd.f32 %v1363, %v1589
    %1595 = vst [vmem:[%s7] sm:$0xff] %v1594
    // Predicated region
    $region54: #{rnn_forward_packed.1} parent=1 // pred_check
      _
    $region55: #{rnn_forward_packed.1} parent=1 // pred_check_branch
      %1597 = sbr.rel (0) target = $region57
    $region56: #{rnn_forward_packed.1} parent=1 // pred_region
      _
    $region57: #{rnn_forward_packed.1} parent=1 // pred_fallthru
      _
    // Predicated region
    $region58: #{rnn_forward_packed.1} parent=1 // pred_check
      _
    $region59: #{rnn_forward_packed.1} parent=1 // pred_check_branch
      %1599 = sbr.rel (0) target = $region61
    $region60: #{rnn_forward_packed.1} parent=1 // pred_region
      _
    $region61: #{rnn_forward_packed.1} parent=1 // pred_fallthru
      _
    %1600 = vsyncpa [#allocation3], 1
    %1601 = vsyncpa [#allocation5], 1
    %1602 = vsyncpa [#allocation8], 1
    %1603 = vsyncpa [#allocation11], 1

</llo_original>
